<compile_context>
chip_gen: v5e
topology: v5e:2x2
jax: 0.10.0
libtpu: 0.0.40
codegen_flags: <defaults>
</compile_context>

<pallas_src>
import jax
import jax.numpy as jnp
from jax.experimental import pallas as pl
from jax.experimental.pallas import tpu as pltpu

VMEM_SPEC = pl.BlockSpec(memory_space=pltpu.MemorySpace.VMEM)
NEG = -1.0e4  # sigmoid(NEG) == 0 exactly -> pad lanes stay exactly zero


def _round_up(x, m):
    return ((x + m - 1) // m) * m


# ----------------------------------------------------------------- kernel ---
def _make_kernel(B, N, T, c_out):
    """Rows = B*N nodes.  Lanes = (time, concat-channel): lane = t*2*Cout + c,
    c in [0, Cout) -> temporal1 / t4 path, c in [Cout, 2*Cout) -> temporal2/t3."""
    GRP = 2 * c_out                     # 16 lanes per timestep group
    REAL = T * GRP                      # 192 data-carrying output lanes
    SLAB = _round_up(REAL, 128)         # 256: 128-aligned branch slab width
    bf16 = jnp.bfloat16

    def kernel(x_ref, h1_ref, b1_ref, ak_ref, thk_ref, h2_ref, b2_ref,
               attb_ref, g_ref, be_ref, out_ref):

        def timeblock(x_bf, h_ref, b_ref):
            # Taps + the 3 conv branches are folded into a single MXU pass.
            # Branch slabs are 128-aligned -> the slices below are free views.
            z = jnp.dot(x_bf, h_ref[...],
                        preferred_element_type=jnp.float32) + b_ref[...]
            z1 = z[:, 0:SLAB]
            z2 = z[:, SLAB:2 * SLAB]          # sigmoid gate branch
            z3 = z[:, 2 * SLAB:3 * SLAB]
            # pad lanes: z1 = z3 = 0 and bias2 = -1e4 => sigmoid(z2) = 0 => 0.
            return jnp.maximum(z1 + jax.nn.sigmoid(z2) + z3, 0.0)

        # temporal1: (B*N, Cin*T) -> (B*N, SLAB); channels land at lanes t*GRP+c
        t1 = timeblock(x_ref[...].astype(bf16), h1_ref, b1_ref)

        # graph conv: node mix with kron(I_B, A_hat), channel mix with the
        # time-blocked Theta (t2 uses a compact (time, c_spatial) lane layout).
        lfs = jnp.dot(ak_ref[...], t1.astype(bf16),
                      preferred_element_type=jnp.float32)
        t2 = jnp.maximum(
            jnp.dot(lfs.astype(bf16), thk_ref[...],
                    preferred_element_type=jnp.float32), 0.0)

        # temporal2: channels land at lanes t*GRP + Cout + c (disjoint from t1)
        t3 = timeblock(t2.astype(bf16), h2_ref, b2_ref)

        # attention: att[t] = sigmoid(relu(mean_{b,n,c} t1 + mean_{b,n,c} t3)).
        # attb does the per-time reduce, the 1/(B*N*Cout) scale and the lane
        # broadcast back over each 16-lane time group in one small matmul.
        s13 = jnp.sum(t1 + t3, axis=0, keepdims=True)              # (1, SLAB)
        att = jax.nn.sigmoid(jnp.maximum(
            jnp.dot(s13.astype(bf16), attb_ref[...],
                    preferred_element_type=jnp.float32), 0.0))
        # t5 == cat([t1*att, t3], channel), already interleaved in the lanes.
        t5 = t1 * att + t3

        # BatchNorm2d(num_nodes): training-mode batch statistics, single pass.
        rs = jnp.sum(t5, axis=1, keepdims=True)                    # (B*N, 1)
        rq = jnp.sum(t5 * t5, axis=1, keepdims=True)
        s_n, q_n = rs[0:N], rq[0:N]
        for b in range(1, B):                                      # static unroll
            s_n = s_n + rs[b * N:(b + 1) * N]
            q_n = q_n + rq[b * N:(b + 1) * N]
        inv_cnt = 1.0 / float(B * T * GRP)
        mean = s_n * inv_cnt                                       # (N, 1)
        var = q_n * inv_cnt - mean * mean
        scale_n = jax.lax.rsqrt(var + 1e-5) * g_ref[...]
        shift_n = be_ref[...] - mean * scale_n
        scale = jnp.concatenate([scale_n] * B, axis=0)             # (B*N, 1)
        shift = jnp.concatenate([shift_n] * B, axis=0)

        # Single full-width store; wrapper does a pure reshape afterwards.
        out_ref[...] = (t5 * scale + shift)[:, :REAL]

    return kernel


# ----------------------------------------- parameter-only constant folding ---
def build_stgcn_constants(params, a_hat, B, N, T):
    """Fold taps+branches, kron matrices and the attention reduce/broadcast
    matrix into matmul-ready constants.  Called ONCE, outside the per-step jit."""
    f32, bf16 = jnp.float32, jnp.bfloat16
    c_in, c_out = params["w1"].shape[2], params["w1"].shape[3]
    c_sp = params["w2"].shape[2]
    GRP = 2 * c_out
    REAL = T * GRP
    SLAB = _round_up(REAL, 128)
    TCSP = _round_up(T * c_sp, 128)

    eye_t = jnp.eye(T, dtype=f32)
    # shifts[k][s, t] == 1  <=>  output time t reads input time s = t + k - 1
    # (zero padding at the time borders falls out automatically).
    shifts = jnp.stack([jnp.eye(T, T, k=1, dtype=f32), eye_t,
                        jnp.eye(T, T, k=-1, dtype=f32)])

    def fold_timeblock(w, b, ch_off):
        """w: (3 conv, 3 tap, Ci, Co), b: (3, Co).
        Output lane inside branch a: t*GRP + ch_off + co; slab width SLAB."""
        ci, co = w.shape[2], w.shape[3]
        e = jnp.einsum("akio,kst->siato", w, shifts)       # (T, Ci, 3, T, Co)
        e = jnp.pad(e, ((0, 0), (0, 0), (0, 0), (0, 0),
                        (ch_off, GRP - ch_off - co)))
        e = e.reshape(T * ci, 3, REAL)
        e = jnp.pad(e, ((0, 0), (0, 0), (0, SLAB - REAL)))
        hmat = e.reshape(T * ci, 3 * SLAB)

        def branch_bias(b_a, fill):
            grp = jnp.full((GRP,), fill, f32).at[ch_off:ch_off + co].set(b_a)
            return jnp.concatenate(
                [jnp.tile(grp, T), jnp.full((SLAB - REAL,), fill, f32)])

        # sigmoid branch (index 1) gets NEG on every non-data lane so that
        # sigmoid() contributes exactly 0 there and pad lanes stay exactly 0.
        bias = jnp.concatenate([branch_bias(b[0], 0.0),
                                branch_bias(b[1], NEG),
                                branch_bias(b[2], 0.0)]).reshape(1, 3 * SLAB)
        return hmat, bias

    h1, b1v = fold_timeblock(params["w1"], params["b1"], ch_off=0)
    h2, b2v = fold_timeblock(params["w2"], params["b2"], ch_off=c_out)
    h2 = jnp.pad(h2, ((0, TCSP - T * c_sp), (0, 0)))       # pad contraction rows

    # channel mix: (t, c_out) lanes (stride GRP) -> compact (t, c_spatial) lanes
    theta_pad = jnp.zeros((GRP, c_sp), f32).at[:c_out, :].set(params["theta"])
    thk = jnp.pad(jnp.kron(eye_t, theta_pad),
                  ((0, SLAB - REAL), (0, TCSP - T * c_sp)))

    # node mix over the row axis (b, n)
    ak = jnp.kron(jnp.eye(B, dtype=f32), a_hat.astype(f32))

    # attention reduce-and-broadcast: sums each 16-lane time group (t1 + t3
    # channels), scales by 1/(B*N*Cout) and broadcasts back over the group.
    attb = jnp.pad(
        jnp.kron(eye_t, jnp.ones((GRP, GRP), f32)) / float(B * N * c_out),
        ((0, SLAB - REAL), (0, SLAB - REAL)))

    gamma = params["bn_gamma"].reshape(N, 1).astype(f32)
    beta = params["bn_beta"].reshape(N, 1).astype(f32)

    # bf16 MXU operands (f32 accumulation); biases / BN affines stay f32.
    return dict(h1=h1.astype(bf16), b1=b1v, ak=ak.astype(bf16),
                thk=thk.astype(bf16), h2=h2.astype(bf16), b2=b2v,
                attb=attb.astype(bf16), gamma=gamma, beta=beta)


# ---------------------------------------------------------------- wrapper ---
def make_stgcn_forward(params, a_hat, B, N, T):
    """Build constants once; return a jitted per-step forward x -> (B,N,T,2*Cout)."""
    c_in, c_out = params["w1"].shape[2], params["w1"].shape[3]
    c_sp = params["w2"].shape[2]
    GRP = 2 * c_out
    REAL = T * GRP
    SLAB = _round_up(REAL, 128)
    TCSP = _round_up(T * c_sp, 128)
    rows = B * N

    consts = build_stgcn_constants(params, a_hat, B, N, T)
    operands = [consts[k] for k in
                ("h1", "b1", "ak", "thk", "h2", "b2", "attb", "gamma", "beta")]

    flops = 2 * rows * (T * c_in * 3 * SLAB      # temporal1
                        + rows * SLAB            # node mix
                        + SLAB * TCSP            # channel mix
                        + TCSP * 3 * SLAB)       # temporal2
    flops += 2 * SLAB * SLAB                     # attention
    transcendentals = rows * 2 * SLAB + SLAB + N  # sigmoids + rsqrt
    bytes_accessed = (rows * T * c_in * 4 + rows * REAL * 4
                      + sum(int(v.size) * v.dtype.itemsize for v in operands))

    call = pl.pallas_call(
        _make_kernel(B, N, T, c_out),
        out_shape=jax.ShapeDtypeStruct((rows, REAL), jnp.float32),
        in_specs=[VMEM_SPEC] * 10,
        out_specs=VMEM_SPEC,
        cost_estimate=pl.CostEstimate(flops=flops,
                                      transcendentals=transcendentals,
                                      bytes_accessed=bytes_accessed),
    )

    @jax.jit
    def forward(x):
        # (B, N, T, Cin) -> (B*N, T*Cin): pure reshape (lane = t*Cin + ci).
        x_rows = x.reshape(rows, T * c_in)
        out = call(x_rows, *operands)
        # (B*N, T*2*Cout), lanes (time, concat-channel) -> pure reshape.
        return out.reshape(B, N, T, GRP)

    return forward


# ---------------------------------------------------- pure-JAX reference ----
def _bf16_mm(subscripts, a, b):
    """Matmul with bf16 operands + f32 accumulation (matches the single-pass
    bf16 MXU path the Pallas kernel uses)."""
    return jnp.einsum(subscripts, a.astype(jnp.bfloat16), b.astype(jnp.bfloat16),
                      preferred_element_type=jnp.float32)


def _timeblock_ref(x, w, b):
    zeros = jnp.zeros_like(x[:, :, :1, :])
    xs = [jnp.concatenate([zeros, x[:, :, :-1, :]], axis=2), x,
          jnp.concatenate([x[:, :, 1:, :], zeros], axis=2)]

    def conv(ci):
        return sum(_bf16_mm("bntc,cd->bntd", xs[k], w[ci, k])
                   for k in range(3)) + b[ci]

    return jax.nn.relu(conv(0) + jax.nn.sigmoid(conv(1)) + conv(2))


def stgcn_block_ref(params, x, a_hat):
    t1 = _timeblock_ref(x, params["w1"], params["b1"])
    lfs = _bf16_mm("ij,bjtc->bitc", a_hat, t1)
    t2 = jax.nn.relu(_bf16_mm("bitc,cp->bitp", lfs, params["theta"]))
    t3 = _timeblock_ref(t2, params["w2"], params["b2"])
    p1 = jnp.mean(t1, axis=(0, 1, 3))
    p2 = jnp.mean(t3, axis=(0, 1, 3))
    att = jax.nn.sigmoid(jax.nn.relu(p1 + p2))
    t4 = t1 * att[None, None, :, None]
    t5 = jnp.concatenate([t4, t3], axis=3)
    mean = jnp.mean(t5, axis=(0, 2, 3), keepdims=True)
    var = jnp.mean((t5 - mean) ** 2, axis=(0, 2, 3), keepdims=True)
    n = x.shape[1]
    return ((t5 - mean) / jnp.sqrt(var + 1e-5)
            * params["bn_gamma"].reshape(1, n, 1, 1)
            + params["bn_beta"].reshape(1, n, 1, 1))


# -------------------------------------------------------------------- main --
if __name__ == "__main__":
    B, N, T = 2, 16, 12          # T = 12 is required by the module's reshape(12)
    C_IN, C_SPATIAL, C_OUT = 4, 8, 8

    key = jax.random.PRNGKey(0)
    k = jax.random.split(key, 8)
    x = jax.random.normal(k[0], (B, N, T, C_IN), jnp.float32)
    a_raw = jax.random.uniform(k[1], (N, N), jnp.float32)
    a_sym = a_raw + a_raw.T + jnp.eye(N, dtype=jnp.float32)
    deg = jnp.sum(a_sym, axis=1)
    a_hat = a_sym / jnp.sqrt(deg[:, None] * deg[None, :])   # normalized adjacency

    stdv = 1.0 / (C_SPATIAL ** 0.5)
    params = {
        # conv weights stored as (conv_idx, tap_idx, Cin, Cout); equivalent to
        # PyTorch Conv2d weight[co, ci, 0, tap] transposed (synthetic init).
        "w1": 0.3 * jax.random.normal(k[2], (3, 3, C_IN, C_OUT), jnp.float32),
        "b1": 0.1 * jax.random.normal(k[3], (3, C_OUT), jnp.float32),
        "theta": jax.random.uniform(k[4], (C_OUT, C_SPATIAL), jnp.float32,
                                    minval=-stdv, maxval=stdv),
        "w2": 0.3 * jax.random.normal(k[5], (3, 3, C_SPATIAL, C_OUT), jnp.float32),
        "b2": 0.1 * jax.random.normal(k[6], (3, C_OUT), jnp.float32),
        "bn_gamma": jnp.ones((N,), jnp.float32),   # BatchNorm2d default init
        "bn_beta": jnp.zeros((N,), jnp.float32),
    }

    forward = make_stgcn_forward(params, a_hat, B, N, T)   # constants built once
    out = jax.block_until_ready(forward(x))

    ref = stgcn_block_ref(params, x, a_hat)
    assert out.shape == (B, N, T, 2 * C_OUT), out.shape
    err = float(jnp.max(jnp.abs(out - ref)))
    # kernel and reference both use bf16 MXU operands with f32 accumulation
    assert jnp.allclose(out, ref, rtol=2e-3, atol=2e-3), err
    print("KERNEL_OK")
</pallas_src>

<mosaic_0001>
module attributes {stable_mosaic.version = 11 : i64} {
  func.func @kernel(%arg0: memref<32x48xf32, #tpu.memory_space<vmem>>, %arg1: memref<48x768xbf16, #tpu.memory_space<vmem>>, %arg2: memref<1x768xf32, #tpu.memory_space<vmem>>, %arg3: memref<32x32xbf16, #tpu.memory_space<vmem>>, %arg4: memref<256x128xbf16, #tpu.memory_space<vmem>>, %arg5: memref<128x768xbf16, #tpu.memory_space<vmem>>, %arg6: memref<1x768xf32, #tpu.memory_space<vmem>>, %arg7: memref<256x256xbf16, #tpu.memory_space<vmem>>, %arg8: memref<16x1xf32, #tpu.memory_space<vmem>>, %arg9: memref<16x1xf32, #tpu.memory_space<vmem>>, %arg10: memref<32x192xf32, #tpu.memory_space<vmem>>) attributes {dimension_semantics = [], scalar_prefetch = 0 : i64, scratch_operands = 0 : i64, tpu.core_type = #tpu.core_type<tc>} {
    %c0 = arith.constant 0 : index
    %c0_0 = arith.constant 0 : index
    %0 = vector.load %arg0[%c0, %c0_0] : memref<32x48xf32, #tpu.memory_space<vmem>>, vector<32x48xf32>
    %1 = arith.truncf %0 : vector<32x48xf32> to vector<32x48xbf16>
    %c0_1 = arith.constant 0 : index
    %c0_2 = arith.constant 0 : index
    %2 = vector.load %arg1[%c0_1, %c0_2] : memref<48x768xbf16, #tpu.memory_space<vmem>>, vector<48x768xbf16>
    %cst = arith.constant dense<0.000000e+00> : vector<32x768xf32>
    %3 = tpu.matmul %1, %2, %cst {dimension_numbers = #tpu.dot_dimension_numbers<[1], [0], [0], [1], [0, 0, 1, 1], [], []>} : vector<32x48xbf16>, vector<48x768xbf16>, vector<32x768xf32> -> vector<32x768xf32>
    %c0_3 = arith.constant 0 : index
    %c0_4 = arith.constant 0 : index
    %4 = vector.load %arg2[%c0_3, %c0_4] : memref<1x768xf32, #tpu.memory_space<vmem>>, vector<1x768xf32>
    %5 = vector.broadcast %4 : vector<1x768xf32> to vector<32x768xf32>
    %6 = arith.addf %3, %5 : vector<32x768xf32>
    %7 = vector.extract_strided_slice %6 {offsets = [0, 0], sizes = [32, 256], strides = [1, 1]} : vector<32x768xf32> to vector<32x256xf32>
    %8 = vector.extract_strided_slice %6 {offsets = [0, 256], sizes = [32, 256], strides = [1, 1]} : vector<32x768xf32> to vector<32x256xf32>
    %9 = vector.extract_strided_slice %6 {offsets = [0, 512], sizes = [32, 256], strides = [1, 1]} : vector<32x768xf32> to vector<32x256xf32>
    %10 = arith.negf %8 : vector<32x256xf32>
    %11 = math.exp %10 : vector<32x256xf32>
    %cst_5 = arith.constant 1.000000e+00 : f32
    %12 = vector.broadcast %cst_5 : f32 to vector<32x256xf32>
    %13 = arith.addf %12, %11 : vector<32x256xf32>
    %14 = arith.divf %12, %13 : vector<32x256xf32>
    %15 = arith.addf %7, %14 : vector<32x256xf32>
    %16 = arith.addf %15, %9 : vector<32x256xf32>
    %cst_6 = arith.constant 0.000000e+00 : f32
    %17 = vector.broadcast %cst_6 : f32 to vector<32x256xf32>
    %18 = arith.maximumf %16, %17 : vector<32x256xf32>
    %c0_7 = arith.constant 0 : index
    %c0_8 = arith.constant 0 : index
    %19 = vector.load %arg3[%c0_7, %c0_8] : memref<32x32xbf16, #tpu.memory_space<vmem>>, vector<32x32xbf16>
    %20 = arith.truncf %18 : vector<32x256xf32> to vector<32x256xbf16>
    %cst_9 = arith.constant dense<0.000000e+00> : vector<32x256xf32>
    %21 = tpu.matmul %19, %20, %cst_9 {dimension_numbers = #tpu.dot_dimension_numbers<[1], [0], [0], [1], [0, 0, 1, 1], [], []>} : vector<32x32xbf16>, vector<32x256xbf16>, vector<32x256xf32> -> vector<32x256xf32>
    %22 = arith.truncf %21 : vector<32x256xf32> to vector<32x256xbf16>
    %c0_10 = arith.constant 0 : index
    %c0_11 = arith.constant 0 : index
    %23 = vector.load %arg4[%c0_10, %c0_11] : memref<256x128xbf16, #tpu.memory_space<vmem>>, vector<256x128xbf16>
    %cst_12 = arith.constant dense<0.000000e+00> : vector<32x128xf32>
    %24 = tpu.matmul %22, %23, %cst_12 {dimension_numbers = #tpu.dot_dimension_numbers<[1], [0], [0], [1], [0, 0, 1, 1], [], []>} : vector<32x256xbf16>, vector<256x128xbf16>, vector<32x128xf32> -> vector<32x128xf32>
    %cst_13 = arith.constant 0.000000e+00 : f32
    %25 = vector.broadcast %cst_13 : f32 to vector<32x128xf32>
    %26 = arith.maximumf %24, %25 : vector<32x128xf32>
    %27 = arith.truncf %26 : vector<32x128xf32> to vector<32x128xbf16>
    %c0_14 = arith.constant 0 : index
    %c0_15 = arith.constant 0 : index
    %28 = vector.load %arg5[%c0_14, %c0_15] : memref<128x768xbf16, #tpu.memory_space<vmem>>, vector<128x768xbf16>
    %cst_16 = arith.constant dense<0.000000e+00> : vector<32x768xf32>
    %29 = tpu.matmul %27, %28, %cst_16 {dimension_numbers = #tpu.dot_dimension_numbers<[1], [0], [0], [1], [0, 0, 1, 1], [], []>} : vector<32x128xbf16>, vector<128x768xbf16>, vector<32x768xf32> -> vector<32x768xf32>
    %c0_17 = arith.constant 0 : index
    %c0_18 = arith.constant 0 : index
    %30 = vector.load %arg6[%c0_17, %c0_18] : memref<1x768xf32, #tpu.memory_space<vmem>>, vector<1x768xf32>
    %31 = vector.broadcast %30 : vector<1x768xf32> to vector<32x768xf32>
    %32 = arith.addf %29, %31 : vector<32x768xf32>
    %33 = vector.extract_strided_slice %32 {offsets = [0, 0], sizes = [32, 256], strides = [1, 1]} : vector<32x768xf32> to vector<32x256xf32>
    %34 = vector.extract_strided_slice %32 {offsets = [0, 256], sizes = [32, 256], strides = [1, 1]} : vector<32x768xf32> to vector<32x256xf32>
    %35 = vector.extract_strided_slice %32 {offsets = [0, 512], sizes = [32, 256], strides = [1, 1]} : vector<32x768xf32> to vector<32x256xf32>
    %36 = arith.negf %34 : vector<32x256xf32>
    %37 = math.exp %36 : vector<32x256xf32>
    %cst_19 = arith.constant 1.000000e+00 : f32
    %38 = vector.broadcast %cst_19 : f32 to vector<32x256xf32>
    %39 = arith.addf %38, %37 : vector<32x256xf32>
    %40 = arith.divf %38, %39 : vector<32x256xf32>
    %41 = arith.addf %33, %40 : vector<32x256xf32>
    %42 = arith.addf %41, %35 : vector<32x256xf32>
    %cst_20 = arith.constant 0.000000e+00 : f32
    %43 = vector.broadcast %cst_20 : f32 to vector<32x256xf32>
    %44 = arith.maximumf %42, %43 : vector<32x256xf32>
    %45 = arith.addf %18, %44 : vector<32x256xf32>
    %cst_21 = arith.constant dense<0.000000e+00> : vector<256xf32>
    %46 = vector.multi_reduction <add>, %45, %cst_21 [0] : vector<32x256xf32> to vector<256xf32>
    %47 = vector.shape_cast %46 : vector<256xf32> to vector<1x256xf32>
    %48 = arith.truncf %47 : vector<1x256xf32> to vector<1x256xbf16>
    %c0_22 = arith.constant 0 : index
    %c0_23 = arith.constant 0 : index
    %49 = vector.load %arg7[%c0_22, %c0_23] : memref<256x256xbf16, #tpu.memory_space<vmem>>, vector<256x256xbf16>
    %cst_24 = arith.constant dense<0.000000e+00> : vector<1x256xf32>
    %50 = tpu.matmul %48, %49, %cst_24 {dimension_numbers = #tpu.dot_dimension_numbers<[1], [0], [0], [1], [0, 0, 1, 1], [], []>} : vector<1x256xbf16>, vector<256x256xbf16>, vector<1x256xf32> -> vector<1x256xf32>
    %cst_25 = arith.constant 0.000000e+00 : f32
    %51 = vector.broadcast %cst_25 : f32 to vector<1x256xf32>
    %52 = arith.maximumf %50, %51 : vector<1x256xf32>
    %53 = arith.negf %52 : vector<1x256xf32>
    %54 = math.exp %53 : vector<1x256xf32>
    %cst_26 = arith.constant 1.000000e+00 : f32
    %55 = vector.broadcast %cst_26 : f32 to vector<1x256xf32>
    %56 = arith.addf %55, %54 : vector<1x256xf32>
    %57 = arith.divf %55, %56 : vector<1x256xf32>
    %58 = vector.broadcast %57 : vector<1x256xf32> to vector<32x256xf32>
    %59 = arith.mulf %18, %58 : vector<32x256xf32>
    %60 = arith.addf %59, %44 : vector<32x256xf32>
    %cst_27 = arith.constant dense<0.000000e+00> : vector<32xf32>
    %61 = vector.multi_reduction <add>, %60, %cst_27 [1] : vector<32x256xf32> to vector<32xf32>
    %62 = vector.shape_cast %61 : vector<32xf32> to vector<32x1xf32>
    %63 = arith.mulf %60, %60 : vector<32x256xf32>
    %cst_28 = arith.constant dense<0.000000e+00> : vector<32xf32>
    %64 = vector.multi_reduction <add>, %63, %cst_28 [1] : vector<32x256xf32> to vector<32xf32>
    %65 = vector.shape_cast %64 : vector<32xf32> to vector<32x1xf32>
    %66 = vector.extract_strided_slice %62 {offsets = [0, 0], sizes = [16, 1], strides = [1, 1]} : vector<32x1xf32> to vector<16x1xf32>
    %67 = vector.extract_strided_slice %65 {offsets = [0, 0], sizes = [16, 1], strides = [1, 1]} : vector<32x1xf32> to vector<16x1xf32>
    %68 = vector.extract_strided_slice %62 {offsets = [16, 0], sizes = [16, 1], strides = [1, 1]} : vector<32x1xf32> to vector<16x1xf32>
    %69 = arith.addf %66, %68 : vector<16x1xf32>
    %70 = vector.extract_strided_slice %65 {offsets = [16, 0], sizes = [16, 1], strides = [1, 1]} : vector<32x1xf32> to vector<16x1xf32>
    %71 = arith.addf %67, %70 : vector<16x1xf32>
    %cst_29 = arith.constant 0.00260416674 : f32
    %72 = vector.broadcast %cst_29 : f32 to vector<16x1xf32>
    %73 = arith.mulf %69, %72 : vector<16x1xf32>
    %cst_30 = arith.constant 0.00260416674 : f32
    %74 = vector.broadcast %cst_30 : f32 to vector<16x1xf32>
    %75 = arith.mulf %71, %74 : vector<16x1xf32>
    %76 = arith.mulf %73, %73 : vector<16x1xf32>
    %77 = arith.subf %75, %76 : vector<16x1xf32>
    %cst_31 = arith.constant 9.99999974E-6 : f32
    %78 = vector.broadcast %cst_31 : f32 to vector<16x1xf32>
    %79 = arith.addf %77, %78 : vector<16x1xf32>
    %80 = math.rsqrt %79 : vector<16x1xf32>
    %c0_32 = arith.constant 0 : index
    %c0_33 = arith.constant 0 : index
    %81 = vector.load %arg8[%c0_32, %c0_33] : memref<16x1xf32, #tpu.memory_space<vmem>>, vector<16x1xf32>
    %82 = arith.mulf %80, %81 : vector<16x1xf32>
    %c0_34 = arith.constant 0 : index
    %c0_35 = arith.constant 0 : index
    %83 = vector.load %arg9[%c0_34, %c0_35] : memref<16x1xf32, #tpu.memory_space<vmem>>, vector<16x1xf32>
    %84 = arith.mulf %73, %82 : vector<16x1xf32>
    %85 = arith.subf %83, %84 : vector<16x1xf32>
    %86 = tpu.concatenate %82, %82 in 0 : vector<16x1xf32>, vector<16x1xf32> -> vector<32x1xf32>
    %87 = tpu.concatenate %85, %85 in 0 : vector<16x1xf32>, vector<16x1xf32> -> vector<32x1xf32>
    %88 = vector.broadcast %86 : vector<32x1xf32> to vector<32x256xf32>
    %89 = arith.mulf %60, %88 : vector<32x256xf32>
    %90 = vector.broadcast %87 : vector<32x1xf32> to vector<32x256xf32>
    %91 = arith.addf %89, %90 : vector<32x256xf32>
    %92 = vector.extract_strided_slice %91 {offsets = [0, 0], sizes = [32, 192], strides = [1, 1]} : vector<32x256xf32> to vector<32x192xf32>
    %c0_36 = arith.constant 0 : index
    %c0_37 = arith.constant 0 : index
    %93 = vector.load %arg10[%c0_36, %c0_37] : memref<32x192xf32, #tpu.memory_space<vmem>>, vector<32x192xf32>
    tpu.vector_store %arg10[%c0_36, %c0_37], %92 {strides = array<i32>} : memref<32x192xf32, #tpu.memory_space<vmem>>, vector<32x192xf32>,
    return
  }
}

</mosaic_0001>

<llo_original>
// kernel: forward.1
$region0: #{forward.1}
  #allocation0 [shape = 'u32[]', space=smem, size = 0x4, offset = 0x4, fixed_abs, tag = 'smem constant byte address 0x4 - core index']
  #allocation1 [shape = 'u32[72,128]{1,0:T(1,128)}', space=vmem, size = 0x9000, scoped, tag = 'internal scratch']
  %s0 = inlined_call_operand.vmem [shape: f32[32,48], index: 0, kind: input, shape index: {}]
  %s1 = inlined_call_operand.hbm [shape: bf16[48,768], index: 1, kind: input, shape index: {}]
  %s2 = inlined_call_operand.vmem [shape: f32[1,768], index: 2, kind: input, shape index: {}]
  %s3 = inlined_call_operand.vmem [shape: bf16[32,32], index: 3, kind: input, shape index: {}]
  %s4 = inlined_call_operand.hbm [shape: bf16[256,128], index: 4, kind: input, shape index: {}]
  %s5 = inlined_call_operand.vmem [shape: bf16[128,768], index: 5, kind: input, shape index: {}]
  %s6 = inlined_call_operand.vmem [shape: f32[1,768], index: 6, kind: input, shape index: {}]
  %s7 = inlined_call_operand.hbm [shape: bf16[256,256], index: 7, kind: input, shape index: {}]
  %s8 = inlined_call_operand.vmem [shape: f32[16,1], index: 8, kind: input, shape index: {}]
  %s9 = inlined_call_operand.vmem [shape: f32[16,1], index: 9, kind: input, shape index: {}]
  %s10 = inlined_call_operand.vmem [shape: f32[32,192], index: 10, kind: output, shape index: {}]
  %s11 = sld [smem:[#allocation0]]
  $region62: #{forward.1} parent=0
    _
  %s13 = ssub.s32 1, %s11
  %s14 = scalar_select 0, %s13, %s11
  $region1: #{forward.1} parent=0
    #allocation2 [shape = 'u8[73728]{0}', space=vmem, size = 0x12000, scoped, tag = 'input window, operand 1, single buffered']
    #allocation3 [shape = 's32[1]{0}', space=sflag, size = 0x4, scoped, tag = 'scoped memory for forward.1']
    #allocation4 [shape = 'u8[65536]{0}', space=vmem, size = 0x10000, scoped, tag = 'input window, operand 4, single buffered']
    #allocation5 [shape = 's32[1]{0}', space=sflag, size = 0x4, scoped, tag = 'scoped memory for forward.1']
    #allocation6 [shape = 'u8[131072]{0}', space=vmem, size = 0x20000, scoped, tag = 'input window, operand 7, single buffered']
    %15 = vsyncpa [#allocation3], 0
    %16 = vsyncpa [#allocation5], 0
    // Predicated region
    $region2: #{forward.1} parent=1 // pred_check
      _
    $region3: #{forward.1} parent=1 // pred_check_branch
      %18 = sbr.rel (0) target = $region5
    $region4: #{forward.1} parent=1 // pred_region
      _
    $region5: #{forward.1} parent=1 // pred_fallthru
      _
    // Predicated region
    $region6: #{forward.1} parent=1 // pred_check
      _
    $region7: #{forward.1} parent=1 // pred_check_branch
      %20 = sbr.rel (0) target = $region9
    $region8: #{forward.1} parent=1 // pred_region
      %22 = vsyncadd [#allocation3], 0
      %s23 = sshll.u32 %s1, 4
      %s24 = int_to_ptr.hbm [resolvable:$true] %s23
      %s25 = sshll.u32 [#allocation2], 4
      %s26 = int_to_ptr.vmem [resolvable:$true] %s25
      %31 = dma.hbm_to_vmem [thread:$0]  %s24, 2304, %s26, [#allocation3], 384, 384, 24
    $region9: #{forward.1} parent=1 // pred_fallthru
      _
    // Predicated region
    $region10: #{forward.1} parent=1 // pred_check
      _
    $region11: #{forward.1} parent=1 // pred_check_branch
      %33 = sbr.rel (0) target = $region13
    $region12: #{forward.1} parent=1 // pred_region
      _
    $region13: #{forward.1} parent=1 // pred_fallthru
      _
    // Predicated region
    $region14: #{forward.1} parent=1 // pred_check
      _
    $region15: #{forward.1} parent=1 // pred_check_branch
      %35 = sbr.rel (0) target = $region17
    $region16: #{forward.1} parent=1 // pred_region
      _
    $region17: #{forward.1} parent=1 // pred_fallthru
      _
    // Predicated region
    $region18: #{forward.1} parent=1 // pred_check
      _
    $region19: #{forward.1} parent=1 // pred_check_branch
      %37 = sbr.rel (0) target = $region21
    $region20: #{forward.1} parent=1 // pred_region
      %39 = vsyncadd [#allocation5], 0
      %s40 = sshll.u32 %s4, 4
      %s41 = int_to_ptr.hbm [resolvable:$true] %s40
      %s42 = sshll.u32 [#allocation4], 4
      %s43 = int_to_ptr.vmem [resolvable:$true] %s42
      %48 = dma.hbm_to_vmem [thread:$0]  %s41, 2048, %s43, [#allocation5], 64, 64, 4
    $region21: #{forward.1} parent=1 // pred_fallthru
      _
    // Predicated region
    $region22: #{forward.1} parent=1 // pred_check
      _
    $region23: #{forward.1} parent=1 // pred_check_branch
      %50 = sbr.rel (0) target = $region25
    $region24: #{forward.1} parent=1 // pred_region
      _
    $region25: #{forward.1} parent=1 // pred_fallthru
      _
    // Predicated region
    $region26: #{forward.1} parent=1 // pred_check
      _
    $region27: #{forward.1} parent=1 // pred_check_branch
      %52 = sbr.rel (0) target = $region29
    $region28: #{forward.1} parent=1 // pred_region
      _
    $region29: #{forward.1} parent=1 // pred_fallthru
      _
    // Predicated region
    $region30: #{forward.1} parent=1 // pred_check
      _
    $region31: #{forward.1} parent=1 // pred_check_branch
      %54 = sbr.rel (0) target = $region33
    $region32: #{forward.1} parent=1 // pred_region
      %56 = vsyncadd [#allocation5], 0
      %s57 = sshll.u32 %s7, 4
      %s58 = int_to_ptr.hbm [resolvable:$true] %s57
      %s59 = sshll.u32 [#allocation6], 4
      %s60 = int_to_ptr.vmem [resolvable:$true] %s59
      %65 = dma.hbm_to_vmem [thread:$0]  %s58, 4096, %s60, [#allocation5], 128, 128, 8
    $region33: #{forward.1} parent=1 // pred_fallthru
      _
    // Predicated region
    $region34: #{forward.1} parent=1 // pred_check
      _
    $region35: #{forward.1} parent=1 // pred_check_branch
      %67 = sbr.rel (0) target = $region37
    $region36: #{forward.1} parent=1 // pred_region
      _
    $region37: #{forward.1} parent=1 // pred_fallthru
      _
    // Predicated region
    $region38: #{forward.1} parent=1 // pred_check
      _
    $region39: #{forward.1} parent=1 // pred_check_branch
      %69 = sbr.rel (0) target = $region41
    $region40: #{forward.1} parent=1 // pred_region
      _
    $region41: #{forward.1} parent=1 // pred_fallthru
      _
    // Predicated region
    $region42: #{forward.1} parent=1 // pred_check
      _
    $region43: #{forward.1} parent=1 // pred_check_branch
      %71 = sbr.rel (0) target = $region45
    $region44: #{forward.1} parent=1 // pred_region
      %73 = dma.done [#allocation3], 2304
    $region45: #{forward.1} parent=1 // pred_fallthru
      _
    // Predicated region
    $region46: #{forward.1} parent=1 // pred_check
      _
    $region47: #{forward.1} parent=1 // pred_check_branch
      %75 = sbr.rel (0) target = $region49
    $region48: #{forward.1} parent=1 // pred_region
      %77 = dma.done [#allocation5], 2048
    $region49: #{forward.1} parent=1 // pred_fallthru
      _
    // Predicated region
    $region50: #{forward.1} parent=1 // pred_check
      _
    $region51: #{forward.1} parent=1 // pred_check_branch
      %79 = sbr.rel (0) target = $region53
    $region52: #{forward.1} parent=1 // pred_region
      %81 = dma.done [#allocation5], 4096
    $region53: #{forward.1} parent=1 // pred_fallthru
      _
    %v83 = vld [vmem:[%s0] sm:$0xff]
    %v84 = vld [vmem:[%s0 + $0x8] sm:$0xff]
    %v85 = vld [vmem:[%s0 + $0x10] sm:$0xff]
    %v86 = vld [vmem:[%s0 + $0x18] sm:$0xff]
    %v87 = vpack.c.bf16 %v84, %v83
    %v88 = vpack.c.bf16 %v86, %v85
    %v89 = vld [vmem:[#allocation2] sm:$0xff]
    %v90 = vld [vmem:[#allocation2 + $0x8] sm:$0xff]
    %v91 = vld [vmem:[#allocation2 + $0x10] sm:$0xff]
    %v92 = vld [vmem:[#allocation2 + $0x18] sm:$0xff]
    %v93 = vld [vmem:[#allocation2 + $0x20] sm:$0xff]
    %v94 = vld [vmem:[#allocation2 + $0x28] sm:$0xff]
    %v95 = vld [vmem:[#allocation2 + $0x30] sm:$0xff]
    %v96 = vld [vmem:[#allocation2 + $0x38] sm:$0xff]
    %v97 = vld [vmem:[#allocation2 + $0x40] sm:$0xff]
    %v98 = vld [vmem:[#allocation2 + $0x48] sm:$0xff]
    %v99 = vld [vmem:[#allocation2 + $0x50] sm:$0xff]
    %v100 = vld [vmem:[#allocation2 + $0x58] sm:$0xff]
    %v101 = vld [vmem:[#allocation2 + $0x60] sm:$0xff]
    %v102 = vld [vmem:[#allocation2 + $0x68] sm:$0xff]
    %v103 = vld [vmem:[#allocation2 + $0x70] sm:$0xff]
    %v104 = vld [vmem:[#allocation2 + $0x78] sm:$0xff]
    %v105 = vld [vmem:[#allocation2 + $0x80] sm:$0xff]
    %v106 = vld [vmem:[#allocation2 + $0x88] sm:$0xff]
    %v107 = vld [vmem:[%s2] sm:$0x3f]
    %v109 = vperm.slane %v107, 0
    %v110 = vperm.slane %v107, 1
    %v111 = vperm.slane %v107, 2
    %v112 = vperm.slane %v107, 3
    %v113 = vperm.slane %v107, 4
    %v114 = vperm.slane %v107, 5
    %v139 = vunpack.c.l.b16 %v89
    %v140 = vunpack.c.h.b16 %v89
    %v141 = vunpack.c.l.b16 %v90
    %v142 = vunpack.c.h.b16 %v90
    %v143 = vunpack.c.l.b16 %v91
    %v144 = vunpack.c.h.b16 %v91
    %v145 = vunpack.c.l.b16 %v92
    %v146 = vunpack.c.h.b16 %v92
    %v147 = vunpack.c.l.b16 %v93
    %v148 = vunpack.c.h.b16 %v93
    %v149 = vunpack.c.l.b16 %v94
    %v150 = vunpack.c.h.b16 %v94
    %v151 = vunpack.c.l.b16 %v95
    %v152 = vunpack.c.h.b16 %v95
    %v153 = vunpack.c.l.b16 %v96
    %v154 = vunpack.c.h.b16 %v96
    %v155 = vunpack.c.l.b16 %v97
    %v156 = vunpack.c.h.b16 %v97
    %v157 = vunpack.c.l.b16 %v98
    %v158 = vunpack.c.h.b16 %v98
    %v159 = vunpack.c.l.b16 %v99
    %v160 = vunpack.c.h.b16 %v99
    %v161 = vunpack.c.l.b16 %v100
    %v162 = vunpack.c.h.b16 %v100
    %v163 = vunpack.c.l.b16 %v101
    %v164 = vunpack.c.h.b16 %v101
    %v165 = vunpack.c.l.b16 %v102
    %v166 = vunpack.c.h.b16 %v102
    %v167 = vunpack.c.l.b16 %v103
    %v168 = vunpack.c.h.b16 %v103
    %v169 = vunpack.c.l.b16 %v104
    %v170 = vunpack.c.h.b16 %v104
    %v171 = vunpack.c.l.b16 %v105
    %v172 = vunpack.c.h.b16 %v105
    %v173 = vunpack.c.l.b16 %v106
    %v174 = vunpack.c.h.b16 %v106
    %v175 = vpack.c.b16 %v145, %v139
    %v176 = vpack.c.b16 %v146, %v140
    %v177 = vpack.c.b16 %v147, %v141
    %v178 = vpack.c.b16 %v148, %v142
    %v179 = vpack.c.b16 %v149, %v143
    %v180 = vpack.c.b16 %v150, %v144
    %v181 = vpack.c.b16 %v157, %v151
    %v182 = vpack.c.b16 %v158, %v152
    %v183 = vpack.c.b16 %v159, %v153
    %v184 = vpack.c.b16 %v160, %v154
    %v185 = vpack.c.b16 %v161, %v155
    %v186 = vpack.c.b16 %v162, %v156
    %v187 = vpack.c.b16 %v169, %v163
    %v188 = vpack.c.b16 %v170, %v164
    %v189 = vpack.c.b16 %v171, %v165
    %v190 = vpack.c.b16 %v172, %v166
    %v191 = vpack.c.b16 %v173, %v167
    %v192 = vpack.c.b16 %v174, %v168
    %vm211 = vcmask 392192
    %v213 = vsel %vm211, %v87, 0
    %v216 = vsel %vm211, %v88, 0
    %218 = vmatpush.bf16.msra.mxu0 0
    %219 = vmatpush.bf16.msra.mxu0 0
    %220 = vmatpush.bf16.msra.mxu0 0
    %221 = vmatpush.bf16.msra.mxu0 0
    %222 = vmatpush.bf16.msra.mxu0 0
    %223 = vmatpush.bf16.msra.mxu0 %v187
    %224 = vmatpush.bf16.msra.mxu0 %v181
    %225 = vmatpush.bf16.msra.mxu0 %v175
    %226 = vmatmul.bf16.gmra.mxu0 %v213
    %v227 = vpop.f32.mrf.mxu0
    %v228 = vadd.f32 %v109, %v227
    %v229 = vpop.f32.mrf.mxu0
    %v230 = vadd.f32 %v109, %v229
    %231 = vmatmul.bf16.gmra.mxu0 %v216
    %v232 = vpop.f32.mrf.mxu0
    %v233 = vadd.f32 %v109, %v232
    %v234 = vpop.f32.mrf.mxu0
    %v235 = vadd.f32 %v109, %v234
    %236 = vdwg.mxu0
    %237 = vmatpush.bf16.msra.mxu0 0
    %238 = vmatpush.bf16.msra.mxu0 0
    %239 = vmatpush.bf16.msra.mxu0 0
    %240 = vmatpush.bf16.msra.mxu0 0
    %241 = vmatpush.bf16.msra.mxu0 0
    %242 = vmatpush.bf16.msra.mxu0 %v188
    %243 = vmatpush.bf16.msra.mxu0 %v182
    %244 = vmatpush.bf16.msra.mxu0 %v176
    %245 = vmatmul.bf16.gmra.mxu0 %v213
    %v246 = vpop.f32.mrf.mxu0
    %v247 = vadd.f32 %v110, %v246
    %v248 = vpop.f32.mrf.mxu0
    %v249 = vadd.f32 %v110, %v248
    %250 = vmatmul.bf16.gmra.mxu0 %v216
    %v251 = vpop.f32.mrf.mxu0
    %v252 = vadd.f32 %v110, %v251
    %v253 = vpop.f32.mrf.mxu0
    %v254 = vadd.f32 %v110, %v253
    %255 = vdwg.mxu0
    %256 = vmatpush.bf16.msra.mxu0 0
    %257 = vmatpush.bf16.msra.mxu0 0
    %258 = vmatpush.bf16.msra.mxu0 0
    %259 = vmatpush.bf16.msra.mxu0 0
    %260 = vmatpush.bf16.msra.mxu0 0
    %261 = vmatpush.bf16.msra.mxu0 %v189
    %262 = vmatpush.bf16.msra.mxu0 %v183
    %263 = vmatpush.bf16.msra.mxu0 %v177
    %264 = vmatmul.bf16.gmra.mxu0 %v213
    %v265 = vpop.f32.mrf.mxu0
    %v266 = vadd.f32 %v111, %v265
    %v267 = vpop.f32.mrf.mxu0
    %v268 = vadd.f32 %v111, %v267
    %269 = vmatmul.bf16.gmra.mxu0 %v216
    %v270 = vpop.f32.mrf.mxu0
    %v271 = vadd.f32 %v111, %v270
    %v272 = vpop.f32.mrf.mxu0
    %v273 = vadd.f32 %v111, %v272
    %274 = vdwg.mxu0
    %275 = vmatpush.bf16.msra.mxu0 0
    %276 = vmatpush.bf16.msra.mxu0 0
    %277 = vmatpush.bf16.msra.mxu0 0
    %278 = vmatpush.bf16.msra.mxu0 0
    %279 = vmatpush.bf16.msra.mxu0 0
    %280 = vmatpush.bf16.msra.mxu0 %v190
    %281 = vmatpush.bf16.msra.mxu0 %v184
    %282 = vmatpush.bf16.msra.mxu0 %v178
    %283 = vmatmul.bf16.gmra.mxu0 %v213
    %v284 = vpop.f32.mrf.mxu0
    %v285 = vadd.f32 %v112, %v284
    %v286 = vpop.f32.mrf.mxu0
    %v287 = vadd.f32 %v112, %v286
    %288 = vmatmul.bf16.gmra.mxu0 %v216
    %v289 = vpop.f32.mrf.mxu0
    %v290 = vadd.f32 %v112, %v289
    %v291 = vpop.f32.mrf.mxu0
    %v292 = vadd.f32 %v112, %v291
    %293 = vdwg.mxu0
    %294 = vmatpush.bf16.msra.mxu0 0
    %295 = vmatpush.bf16.msra.mxu0 0
    %296 = vmatpush.bf16.msra.mxu0 0
    %297 = vmatpush.bf16.msra.mxu0 0
    %298 = vmatpush.bf16.msra.mxu0 0
    %299 = vmatpush.bf16.msra.mxu0 %v191
    %300 = vmatpush.bf16.msra.mxu0 %v185
    %301 = vmatpush.bf16.msra.mxu0 %v179
    %302 = vmatmul.bf16.gmra.mxu0 %v213
    %v303 = vpop.f32.mrf.mxu0
    %v304 = vadd.f32 %v113, %v303
    %v305 = vpop.f32.mrf.mxu0
    %v306 = vadd.f32 %v113, %v305
    %307 = vmatmul.bf16.gmra.mxu0 %v216
    %v308 = vpop.f32.mrf.mxu0
    %v309 = vadd.f32 %v113, %v308
    %v310 = vpop.f32.mrf.mxu0
    %v311 = vadd.f32 %v113, %v310
    %312 = vdwg.mxu0
    %313 = vmatpush.bf16.msra.mxu0 0
    %314 = vmatpush.bf16.msra.mxu0 0
    %315 = vmatpush.bf16.msra.mxu0 0
    %316 = vmatpush.bf16.msra.mxu0 0
    %317 = vmatpush.bf16.msra.mxu0 0
    %318 = vmatpush.bf16.msra.mxu0 %v192
    %319 = vmatpush.bf16.msra.mxu0 %v186
    %320 = vmatpush.bf16.msra.mxu0 %v180
    %321 = vmatmul.bf16.gmra.mxu0 %v213
    %v322 = vpop.f32.mrf.mxu0
    %v323 = vadd.f32 %v114, %v322
    %v324 = vpop.f32.mrf.mxu0
    %v325 = vadd.f32 %v114, %v324
    %326 = vmatmul.bf16.gmra.mxu0 %v216
    %v327 = vpop.f32.mrf.mxu0
    %v328 = vadd.f32 %v114, %v327
    %v329 = vpop.f32.mrf.mxu0
    %v330 = vadd.f32 %v114, %v329
    %331 = vdwg.mxu0
    %v332 = vxor.u32 %v266, 2147483648
    %v333 = vxor.u32 %v285, 2147483648
    %v334 = vxor.u32 %v268, 2147483648
    %v335 = vxor.u32 %v287, 2147483648
    %v336 = vxor.u32 %v271, 2147483648
    %v337 = vxor.u32 %v290, 2147483648
    %v338 = vxor.u32 %v273, 2147483648
    %v339 = vxor.u32 %v292, 2147483648
    %v340 = vmul.f32 %v332, 1.442695
    %v341 = vpow.pop %v340
    %v342 = vmul.f32 %v333, 1.442695
    %v343 = vpow.pop %v342
    %v344 = vmul.f32 %v334, 1.442695
    %v345 = vpow.pop %v344
    %v346 = vmul.f32 %v335, 1.442695
    %v347 = vpow.pop %v346
    %v348 = vmul.f32 %v336, 1.442695
    %v349 = vpow.pop %v348
    %v350 = vmul.f32 %v337, 1.442695
    %v351 = vpow.pop %v350
    %v352 = vmul.f32 %v338, 1.442695
    %v353 = vpow.pop %v352
    %v354 = vmul.f32 %v339, 1.442695
    %v355 = vpow.pop %v354
    %v356 = vadd.f32 %v341, 1.0
    %v357 = vadd.f32 %v343, 1.0
    %v358 = vadd.f32 %v345, 1.0
    %v359 = vadd.f32 %v347, 1.0
    %v360 = vadd.f32 %v349, 1.0
    %v361 = vadd.f32 %v351, 1.0
    %v362 = vadd.f32 %v353, 1.0
    %v363 = vadd.f32 %v355, 1.0
    %v364 = vrcp.pop %v356
    %v365 = vmul.f32 %v356, %v364
    %v366 = vsub.f32 1.0, %v365
    %v367 = vmul.f32 %v364, %v366
    %v368 = vadd.f32 %v364, %v367
    %vm369 = vweird.f32 %v356
    %vm370 = vweird.f32 %v364
    %vm371 = vmor %vm369, %vm370
    %v372 = vsel %vm371, %v364, %v368
    %v373 = vand.u32 2147483647, %v356
    %vm374 = vcmp.eq.f32.partialorder %v373, 8.507059e+37
    %v375 = vand.u32 %v356, 2147483648
    %v376 = vor.u32 1.1754944e-38, %v375
    %v377 = vsel %vm374, %v376, %v372
    %v378 = vmul.f32 1.0, %v377
    %v379 = vrcp.pop %v357
    %v380 = vmul.f32 %v357, %v379
    %v381 = vsub.f32 1.0, %v380
    %v382 = vmul.f32 %v379, %v381
    %v383 = vadd.f32 %v379, %v382
    %vm384 = vweird.f32 %v357
    %vm385 = vweird.f32 %v379
    %vm386 = vmor %vm384, %vm385
    %v387 = vsel %vm386, %v379, %v383
    %v388 = vand.u32 2147483647, %v357
    %vm389 = vcmp.eq.f32.partialorder %v388, 8.507059e+37
    %v390 = vand.u32 %v357, 2147483648
    %v391 = vor.u32 1.1754944e-38, %v390
    %v392 = vsel %vm389, %v391, %v387
    %v393 = vmul.f32 1.0, %v392
    %v394 = vrcp.pop %v358
    %v395 = vmul.f32 %v358, %v394
    %v396 = vsub.f32 1.0, %v395
    %v397 = vmul.f32 %v394, %v396
    %v398 = vadd.f32 %v394, %v397
    %vm399 = vweird.f32 %v358
    %vm400 = vweird.f32 %v394
    %vm401 = vmor %vm399, %vm400
    %v402 = vsel %vm401, %v394, %v398
    %v403 = vand.u32 2147483647, %v358
    %vm404 = vcmp.eq.f32.partialorder %v403, 8.507059e+37
    %v405 = vand.u32 %v358, 2147483648
    %v406 = vor.u32 1.1754944e-38, %v405
    %v407 = vsel %vm404, %v406, %v402
    %v408 = vmul.f32 1.0, %v407
    %v409 = vrcp.pop %v359
    %v410 = vmul.f32 %v359, %v409
    %v411 = vsub.f32 1.0, %v410
    %v412 = vmul.f32 %v409, %v411
    %v413 = vadd.f32 %v409, %v412
    %vm414 = vweird.f32 %v359
    %vm415 = vweird.f32 %v409
    %vm416 = vmor %vm414, %vm415
    %v417 = vsel %vm416, %v409, %v413
    %v418 = vand.u32 2147483647, %v359
    %vm419 = vcmp.eq.f32.partialorder %v418, 8.507059e+37
    %v420 = vand.u32 %v359, 2147483648
    %v421 = vor.u32 1.1754944e-38, %v420
    %v422 = vsel %vm419, %v421, %v417
    %v423 = vmul.f32 1.0, %v422
    %v424 = vrcp.pop %v360
    %v425 = vmul.f32 %v360, %v424
    %v426 = vsub.f32 1.0, %v425
    %v427 = vmul.f32 %v424, %v426
    %v428 = vadd.f32 %v424, %v427
    %vm429 = vweird.f32 %v360
    %vm430 = vweird.f32 %v424
    %vm431 = vmor %vm429, %vm430
    %v432 = vsel %vm431, %v424, %v428
    %v433 = vand.u32 2147483647, %v360
    %vm434 = vcmp.eq.f32.partialorder %v433, 8.507059e+37
    %v435 = vand.u32 %v360, 2147483648
    %v436 = vor.u32 1.1754944e-38, %v435
    %v437 = vsel %vm434, %v436, %v432
    %v438 = vmul.f32 1.0, %v437
    %v439 = vrcp.pop %v361
    %v440 = vmul.f32 %v361, %v439
    %v441 = vsub.f32 1.0, %v440
    %v442 = vmul.f32 %v439, %v441
    %v443 = vadd.f32 %v439, %v442
    %vm444 = vweird.f32 %v361
    %vm445 = vweird.f32 %v439
    %vm446 = vmor %vm444, %vm445
    %v447 = vsel %vm446, %v439, %v443
    %v448 = vand.u32 2147483647, %v361
    %vm449 = vcmp.eq.f32.partialorder %v448, 8.507059e+37
    %v450 = vand.u32 %v361, 2147483648
    %v451 = vor.u32 1.1754944e-38, %v450
    %v452 = vsel %vm449, %v451, %v447
    %v453 = vmul.f32 1.0, %v452
    %v454 = vrcp.pop %v362
    %v455 = vmul.f32 %v362, %v454
    %v456 = vsub.f32 1.0, %v455
    %v457 = vmul.f32 %v454, %v456
    %v458 = vadd.f32 %v454, %v457
    %vm459 = vweird.f32 %v362
    %vm460 = vweird.f32 %v454
    %vm461 = vmor %vm459, %vm460
    %v462 = vsel %vm461, %v454, %v458
    %v463 = vand.u32 2147483647, %v362
    %vm464 = vcmp.eq.f32.partialorder %v463, 8.507059e+37
    %v465 = vand.u32 %v362, 2147483648
    %v466 = vor.u32 1.1754944e-38, %v465
    %v467 = vsel %vm464, %v466, %v462
    %v468 = vmul.f32 1.0, %v467
    %v469 = vrcp.pop %v363
    %v470 = vmul.f32 %v363, %v469
    %v471 = vsub.f32 1.0, %v470
    %v472 = vmul.f32 %v469, %v471
    %v473 = vadd.f32 %v469, %v472
    %vm474 = vweird.f32 %v363
    %vm475 = vweird.f32 %v469
    %vm476 = vmor %vm474, %vm475
    %v477 = vsel %vm476, %v469, %v473
    %v478 = vand.u32 2147483647, %v363
    %vm479 = vcmp.eq.f32.partialorder %v478, 8.507059e+37
    %v480 = vand.u32 %v363, 2147483648
    %v481 = vor.u32 1.1754944e-38, %v480
    %v482 = vsel %vm479, %v481, %v477
    %v483 = vmul.f32 1.0, %v482
    %v484 = vadd.f32 %v228, %v378
    %v485 = vadd.f32 %v247, %v393
    %v486 = vadd.f32 %v230, %v408
    %v487 = vadd.f32 %v249, %v423
    %v488 = vadd.f32 %v233, %v438
    %v489 = vadd.f32 %v252, %v453
    %v490 = vadd.f32 %v235, %v468
    %v491 = vadd.f32 %v254, %v483
    %v492 = vadd.f32 %v484, %v304
    %v493 = vadd.f32 %v485, %v323
    %v494 = vadd.f32 %v486, %v306
    %v495 = vadd.f32 %v487, %v325
    %v496 = vadd.f32 %v488, %v309
    %v497 = vadd.f32 %v489, %v328
    %v498 = vadd.f32 %v490, %v311
    %v499 = vadd.f32 %v491, %v330
    %v500 = vmax.f32 %v492, 0.0
    %v501 = vmax.f32 %v493, 0.0
    %v502 = vmax.f32 %v494, 0.0
    %v503 = vmax.f32 %v495, 0.0
    %v504 = vmax.f32 %v496, 0.0
    %v505 = vmax.f32 %v497, 0.0
    %v506 = vmax.f32 %v498, 0.0
    %v507 = vmax.f32 %v499, 0.0
    %v508 = vld [vmem:[%s3] sm:$0xf]
    %v509 = vld [vmem:[%s3 + $0x4] sm:$0xf]
    %v510 = vld [vmem:[%s3 + $0x8] sm:$0xf]
    %v511 = vld [vmem:[%s3 + $0xc] sm:$0xf]
    %v512 = vpack.c.bf16 %v502, %v500
    %v513 = vpack.c.bf16 %v503, %v501
    %v514 = vpack.c.bf16 %v506, %v504
    %v515 = vpack.c.bf16 %v507, %v505
    %v520 = vunpack.c.l.b16 %v508
    %v521 = vunpack.c.l.b16 %v509
    %v522 = vunpack.c.l.b16 %v510
    %v523 = vunpack.c.l.b16 %v511
    %v524 = vpack.c.b16 %v521, %v520
    %v525 = vpack.c.b16 %v523, %v522
    %vm526 = vcmask 261120
    %v528 = vsel %vm526, %v524, 0
    %v531 = vsel %vm526, %v525, 0
    %533 = vmatpush.bf16.msra.mxu0 0
    %534 = vmatpush.bf16.msra.mxu0 0
    %535 = vmatpush.bf16.msra.mxu0 0
    %536 = vmatpush.bf16.msra.mxu0 0
    %537 = vmatpush.bf16.msra.mxu0 0
    %538 = vmatpush.bf16.msra.mxu0 0
    %539 = vmatpush.bf16.msra.mxu0 %v514
    %540 = vmatpush.bf16.msra.mxu0 %v512
    %541 = vmatmul.bf16.gmra.mxu0 %v528
    %v542 = vpop.f32.mrf.mxu0
    %v543 = vadd.f32 0.0, %v542
    %v544 = vpop.f32.mrf.mxu0
    %v545 = vadd.f32 0.0, %v544
    %546 = vmatmul.bf16.gmra.mxu0 %v531
    %v547 = vpop.f32.mrf.mxu0
    %v548 = vadd.f32 0.0, %v547
    %v549 = vpop.f32.mrf.mxu0
    %v550 = vadd.f32 0.0, %v549
    %551 = vdwg.mxu0
    %552 = vmatpush.bf16.msra.mxu0 0
    %553 = vmatpush.bf16.msra.mxu0 0
    %554 = vmatpush.bf16.msra.mxu0 0
    %555 = vmatpush.bf16.msra.mxu0 0
    %556 = vmatpush.bf16.msra.mxu0 0
    %557 = vmatpush.bf16.msra.mxu0 0
    %558 = vmatpush.bf16.msra.mxu0 %v515
    %559 = vmatpush.bf16.msra.mxu0 %v513
    %560 = vmatmul.bf16.gmra.mxu0 %v528
    %v561 = vpop.f32.mrf.mxu0
    %v562 = vadd.f32 0.0, %v561
    %v563 = vpop.f32.mrf.mxu0
    %v564 = vadd.f32 0.0, %v563
    %565 = vmatmul.bf16.gmra.mxu0 %v531
    %v566 = vpop.f32.mrf.mxu0
    %v567 = vadd.f32 0.0, %v566
    %v568 = vpop.f32.mrf.mxu0
    %v569 = vadd.f32 0.0, %v568
    %570 = vdwg.mxu0
    %v571 = vpack.c.bf16 %v545, %v543
    %v572 = vpack.c.bf16 %v564, %v562
    %v573 = vpack.c.bf16 %v550, %v548
    %v574 = vpack.c.bf16 %v569, %v567
    %v575 = vld [vmem:[#allocation4] sm:$0xf]
    %v576 = vld [vmem:[#allocation4 + $0x4] sm:$0xf]
    %v577 = vld [vmem:[#allocation4 + $0x8] sm:$0xf]
    %v578 = vld [vmem:[#allocation4 + $0xc] sm:$0xf]
    %v579 = vld [vmem:[#allocation4 + $0x10] sm:$0xf]
    %v580 = vld [vmem:[#allocation4 + $0x14] sm:$0xf]
    %v581 = vld [vmem:[#allocation4 + $0x18] sm:$0xf]
    %v582 = vld [vmem:[#allocation4 + $0x1c] sm:$0xf]
    %v583 = vld [vmem:[#allocation4 + $0x20] sm:$0xf]
    %v584 = vld [vmem:[#allocation4 + $0x24] sm:$0xf]
    %v585 = vld [vmem:[#allocation4 + $0x28] sm:$0xf]
    %v586 = vld [vmem:[#allocation4 + $0x2c] sm:$0xf]
    %v587 = vld [vmem:[#allocation4 + $0x30] sm:$0xf]
    %v588 = vld [vmem:[#allocation4 + $0x34] sm:$0xf]
    %v589 = vld [vmem:[#allocation4 + $0x38] sm:$0xf]
    %v590 = vld [vmem:[#allocation4 + $0x3c] sm:$0xf]
    %v591 = vld [vmem:[#allocation4 + $0x40] sm:$0xf]
    %v592 = vld [vmem:[#allocation4 + $0x44] sm:$0xf]
    %v593 = vld [vmem:[#allocation4 + $0x48] sm:$0xf]
    %v594 = vld [vmem:[#allocation4 + $0x4c] sm:$0xf]
    %v595 = vld [vmem:[#allocation4 + $0x50] sm:$0xf]
    %v596 = vld [vmem:[#allocation4 + $0x54] sm:$0xf]
    %v597 = vld [vmem:[#allocation4 + $0x58] sm:$0xf]
    %v598 = vld [vmem:[#allocation4 + $0x5c] sm:$0xf]
    %v599 = vld [vmem:[#allocation4 + $0x60] sm:$0xf]
    %v600 = vld [vmem:[#allocation4 + $0x64] sm:$0xf]
    %v601 = vld [vmem:[#allocation4 + $0x68] sm:$0xf]
    %v602 = vld [vmem:[#allocation4 + $0x6c] sm:$0xf]
    %v603 = vld [vmem:[#allocation4 + $0x70] sm:$0xf]
    %v604 = vld [vmem:[#allocation4 + $0x74] sm:$0xf]
    %v605 = vld [vmem:[#allocation4 + $0x78] sm:$0xf]
    %v606 = vld [vmem:[#allocation4 + $0x7c] sm:$0xf]
    %v639 = vunpack.c.l.b16 %v575
    %v640 = vunpack.c.l.b16 %v576
    %v641 = vunpack.c.l.b16 %v577
    %v642 = vunpack.c.l.b16 %v578
    %v643 = vunpack.c.l.b16 %v579
    %v644 = vunpack.c.l.b16 %v580
    %v645 = vunpack.c.l.b16 %v581
    %v646 = vunpack.c.l.b16 %v582
    %v647 = vunpack.c.l.b16 %v583
    %v648 = vunpack.c.l.b16 %v584
    %v649 = vunpack.c.l.b16 %v585
    %v650 = vunpack.c.l.b16 %v586
    %v651 = vunpack.c.l.b16 %v587
    %v652 = vunpack.c.l.b16 %v588
    %v653 = vunpack.c.l.b16 %v589
    %v654 = vunpack.c.l.b16 %v590
    %v655 = vunpack.c.l.b16 %v591
    %v656 = vunpack.c.l.b16 %v592
    %v657 = vunpack.c.l.b16 %v593
    %v658 = vunpack.c.l.b16 %v594
    %v659 = vunpack.c.l.b16 %v595
    %v660 = vunpack.c.l.b16 %v596
    %v661 = vunpack.c.l.b16 %v597
    %v662 = vunpack.c.l.b16 %v598
    %v663 = vunpack.c.l.b16 %v599
    %v664 = vunpack.c.l.b16 %v600
    %v665 = vunpack.c.l.b16 %v601
    %v666 = vunpack.c.l.b16 %v602
    %v667 = vunpack.c.l.b16 %v603
    %v668 = vunpack.c.l.b16 %v604
    %v669 = vunpack.c.l.b16 %v605
    %v670 = vunpack.c.l.b16 %v606
    %v671 = vpack.c.b16 %v640, %v639
    %v672 = vpack.c.b16 %v642, %v641
    %v673 = vpack.c.b16 %v644, %v643
    %v674 = vpack.c.b16 %v646, %v645
    %v675 = vpack.c.b16 %v648, %v647
    %v676 = vpack.c.b16 %v650, %v649
    %v677 = vpack.c.b16 %v652, %v651
    %v678 = vpack.c.b16 %v654, %v653
    %v679 = vpack.c.b16 %v656, %v655
    %v680 = vpack.c.b16 %v658, %v657
    %v681 = vpack.c.b16 %v660, %v659
    %v682 = vpack.c.b16 %v662, %v661
    %v683 = vpack.c.b16 %v664, %v663
    %v684 = vpack.c.b16 %v666, %v665
    %v685 = vpack.c.b16 %v668, %v667
    %v686 = vpack.c.b16 %v670, %v669
    %703 = vmatpush.bf16.msra.mxu0 %v678
    %704 = vmatpush.bf16.msra.mxu0 %v677
    %705 = vmatpush.bf16.msra.mxu0 %v676
    %706 = vmatpush.bf16.msra.mxu0 %v675
    %707 = vmatpush.bf16.msra.mxu0 %v674
    %708 = vmatpush.bf16.msra.mxu0 %v673
    %709 = vmatpush.bf16.msra.mxu0 %v672
    %710 = vmatpush.bf16.msra.mxu0 %v671
    %711 = vmatmul.bf16.gmra.mxu0 %v571
    %v712 = vpop.f32.mrf.mxu0
    %v713 = vadd.f32 0.0, %v712
    %v714 = vpop.f32.mrf.mxu0
    %v715 = vadd.f32 0.0, %v714
    %716 = vmatmul.bf16.gmra.mxu0 %v573
    %v717 = vpop.f32.mrf.mxu0
    %v718 = vadd.f32 0.0, %v717
    %v719 = vpop.f32.mrf.mxu0
    %v720 = vadd.f32 0.0, %v719
    %721 = vdwg.mxu0
    %722 = vmatpush.bf16.msra.mxu0 %v686
    %723 = vmatpush.bf16.msra.mxu0 %v685
    %724 = vmatpush.bf16.msra.mxu0 %v684
    %725 = vmatpush.bf16.msra.mxu0 %v683
    %726 = vmatpush.bf16.msra.mxu0 %v682
    %727 = vmatpush.bf16.msra.mxu0 %v681
    %728 = vmatpush.bf16.msra.mxu0 %v680
    %729 = vmatpush.bf16.msra.mxu0 %v679
    %730 = vmatmul.bf16.gmra.mxu0 %v572
    %v731 = vpop.f32.mrf.mxu0
    %v732 = vadd.f32 %v713, %v731
    %v733 = vpop.f32.mrf.mxu0
    %v734 = vadd.f32 %v715, %v733
    %735 = vmatmul.bf16.gmra.mxu0 %v574
    %v736 = vpop.f32.mrf.mxu0
    %v737 = vadd.f32 %v718, %v736
    %v738 = vpop.f32.mrf.mxu0
    %v739 = vadd.f32 %v720, %v738
    %740 = vdwg.mxu0
    %v741 = vmax.f32 %v732, 0.0
    %v742 = vmax.f32 %v734, 0.0
    %v743 = vmax.f32 %v737, 0.0
    %v744 = vmax.f32 %v739, 0.0
    %v745 = vpack.c.bf16 %v742, %v741
    %v746 = vpack.c.bf16 %v744, %v743
    %v747 = vld [vmem:[%s5] sm:$0xff]
    %v748 = vld [vmem:[%s5 + $0x8] sm:$0xff]
    %v749 = vld [vmem:[%s5 + $0x10] sm:$0xff]
    %v750 = vld [vmem:[%s5 + $0x18] sm:$0xff]
    %v751 = vld [vmem:[%s5 + $0x20] sm:$0xff]
    %v752 = vld [vmem:[%s5 + $0x28] sm:$0xff]
    %v753 = vld [vmem:[%s5 + $0x30] sm:$0xff]
    %v754 = vld [vmem:[%s5 + $0x38] sm:$0xff]
    %v755 = vld [vmem:[%s5 + $0x40] sm:$0xff]
    %v756 = vld [vmem:[%s5 + $0x48] sm:$0xff]
    %v757 = vld [vmem:[%s5 + $0x50] sm:$0xff]
    %v758 = vld [vmem:[%s5 + $0x58] sm:$0xff]
    %v759 = vld [vmem:[%s5 + $0x60] sm:$0xff]
    %v760 = vld [vmem:[%s5 + $0x68] sm:$0xff]
    %v761 = vld [vmem:[%s5 + $0x70] sm:$0xff]
    %v762 = vld [vmem:[%s5 + $0x78] sm:$0xff]
    %v763 = vld [vmem:[%s5 + $0x80] sm:$0xff]
    %v764 = vld [vmem:[%s5 + $0x88] sm:$0xff]
    %v765 = vld [vmem:[%s5 + $0x90] sm:$0xff]
    %v766 = vld [vmem:[%s5 + $0x98] sm:$0xff]
    %v767 = vld [vmem:[%s5 + $0xa0] sm:$0xff]
    %v768 = vld [vmem:[%s5 + $0xa8] sm:$0xff]
    %v769 = vld [vmem:[%s5 + $0xb0] sm:$0xff]
    %v770 = vld [vmem:[%s5 + $0xb8] sm:$0xff]
    %v771 = vld [vmem:[%s5 + $0xc0] sm:$0xff]
    %v772 = vld [vmem:[%s5 + $0xc8] sm:$0xff]
    %v773 = vld [vmem:[%s5 + $0xd0] sm:$0xff]
    %v774 = vld [vmem:[%s5 + $0xd8] sm:$0xff]
    %v775 = vld [vmem:[%s5 + $0xe0] sm:$0xff]
    %v776 = vld [vmem:[%s5 + $0xe8] sm:$0xff]
    %v777 = vld [vmem:[%s5 + $0xf0] sm:$0xff]
    %v778 = vld [vmem:[%s5 + $0xf8] sm:$0xff]
    %v779 = vld [vmem:[%s5 + $0x100] sm:$0xff]
    %v780 = vld [vmem:[%s5 + $0x108] sm:$0xff]
    %v781 = vld [vmem:[%s5 + $0x110] sm:$0xff]
    %v782 = vld [vmem:[%s5 + $0x118] sm:$0xff]
    %v783 = vld [vmem:[%s5 + $0x120] sm:$0xff]
    %v784 = vld [vmem:[%s5 + $0x128] sm:$0xff]
    %v785 = vld [vmem:[%s5 + $0x130] sm:$0xff]
    %v786 = vld [vmem:[%s5 + $0x138] sm:$0xff]
    %v787 = vld [vmem:[%s5 + $0x140] sm:$0xff]
    %v788 = vld [vmem:[%s5 + $0x148] sm:$0xff]
    %v789 = vld [vmem:[%s5 + $0x150] sm:$0xff]
    %v790 = vld [vmem:[%s5 + $0x158] sm:$0xff]
    %v791 = vld [vmem:[%s5 + $0x160] sm:$0xff]
    %v792 = vld [vmem:[%s5 + $0x168] sm:$0xff]
    %v793 = vld [vmem:[%s5 + $0x170] sm:$0xff]
    %v794 = vld [vmem:[%s5 + $0x178] sm:$0xff]
    %v795 = vld [vmem:[%s6] sm:$0x3f]
    %v797 = vperm.slane %v795, 0
    %v798 = vperm.slane %v795, 1
    %v799 = vperm.slane %v795, 2
    %v800 = vperm.slane %v795, 3
    %v801 = vperm.slane %v795, 4
    %v802 = vperm.slane %v795, 5
    %v857 = vunpack.c.l.b16 %v747
    %v858 = vunpack.c.h.b16 %v747
    %v859 = vunpack.c.l.b16 %v748
    %v860 = vunpack.c.h.b16 %v748
    %v861 = vunpack.c.l.b16 %v749
    %v862 = vunpack.c.h.b16 %v749
    %v863 = vunpack.c.l.b16 %v750
    %v864 = vunpack.c.h.b16 %v750
    %v865 = vunpack.c.l.b16 %v751
    %v866 = vunpack.c.h.b16 %v751
    %v867 = vunpack.c.l.b16 %v752
    %v868 = vunpack.c.h.b16 %v752
    %v869 = vunpack.c.l.b16 %v753
    %v870 = vunpack.c.h.b16 %v753
    %v871 = vunpack.c.l.b16 %v754
    %v872 = vunpack.c.h.b16 %v754
    %v873 = vunpack.c.l.b16 %v755
    %v874 = vunpack.c.h.b16 %v755
    %v875 = vunpack.c.l.b16 %v756
    %v876 = vunpack.c.h.b16 %v756
    %v877 = vunpack.c.l.b16 %v757
    %v878 = vunpack.c.h.b16 %v757
    %v879 = vunpack.c.l.b16 %v758
    %v880 = vunpack.c.h.b16 %v758
    %v881 = vunpack.c.l.b16 %v759
    %v882 = vunpack.c.h.b16 %v759
    %v883 = vunpack.c.l.b16 %v760
    %v884 = vunpack.c.h.b16 %v760
    %v885 = vunpack.c.l.b16 %v761
    %v886 = vunpack.c.h.b16 %v761
    %v887 = vunpack.c.l.b16 %v762
    %v888 = vunpack.c.h.b16 %v762
    %v889 = vunpack.c.l.b16 %v763
    %v890 = vunpack.c.h.b16 %v763
    %v891 = vunpack.c.l.b16 %v764
    %v892 = vunpack.c.h.b16 %v764
    %v893 = vunpack.c.l.b16 %v765
    %v894 = vunpack.c.h.b16 %v765
    %v895 = vunpack.c.l.b16 %v766
    %v896 = vunpack.c.h.b16 %v766
    %v897 = vunpack.c.l.b16 %v767
    %v898 = vunpack.c.h.b16 %v767
    %v899 = vunpack.c.l.b16 %v768
    %v900 = vunpack.c.h.b16 %v768
    %v901 = vunpack.c.l.b16 %v769
    %v902 = vunpack.c.h.b16 %v769
    %v903 = vunpack.c.l.b16 %v770
    %v904 = vunpack.c.h.b16 %v770
    %v905 = vunpack.c.l.b16 %v771
    %v906 = vunpack.c.h.b16 %v771
    %v907 = vunpack.c.l.b16 %v772
    %v908 = vunpack.c.h.b16 %v772
    %v909 = vunpack.c.l.b16 %v773
    %v910 = vunpack.c.h.b16 %v773
    %v911 = vunpack.c.l.b16 %v774
    %v912 = vunpack.c.h.b16 %v774
    %v913 = vunpack.c.l.b16 %v775
    %v914 = vunpack.c.h.b16 %v775
    %v915 = vunpack.c.l.b16 %v776
    %v916 = vunpack.c.h.b16 %v776
    %v917 = vunpack.c.l.b16 %v777
    %v918 = vunpack.c.h.b16 %v777
    %v919 = vunpack.c.l.b16 %v778
    %v920 = vunpack.c.h.b16 %v778
    %v921 = vunpack.c.l.b16 %v779
    %v922 = vunpack.c.h.b16 %v779
    %v923 = vunpack.c.l.b16 %v780
    %v924 = vunpack.c.h.b16 %v780
    %v925 = vunpack.c.l.b16 %v781
    %v926 = vunpack.c.h.b16 %v781
    %v927 = vunpack.c.l.b16 %v782
    %v928 = vunpack.c.h.b16 %v782
    %v929 = vunpack.c.l.b16 %v783
    %v930 = vunpack.c.h.b16 %v783
    %v931 = vunpack.c.l.b16 %v784
    %v932 = vunpack.c.h.b16 %v784
    %v933 = vunpack.c.l.b16 %v785
    %v934 = vunpack.c.h.b16 %v785
    %v935 = vunpack.c.l.b16 %v786
    %v936 = vunpack.c.h.b16 %v786
    %v937 = vunpack.c.l.b16 %v787
    %v938 = vunpack.c.h.b16 %v787
    %v939 = vunpack.c.l.b16 %v788
    %v940 = vunpack.c.h.b16 %v788
    %v941 = vunpack.c.l.b16 %v789
    %v942 = vunpack.c.h.b16 %v789
    %v943 = vunpack.c.l.b16 %v790
    %v944 = vunpack.c.h.b16 %v790
    %v945 = vunpack.c.l.b16 %v791
    %v946 = vunpack.c.h.b16 %v791
    %v947 = vunpack.c.l.b16 %v792
    %v948 = vunpack.c.h.b16 %v792
    %v949 = vunpack.c.l.b16 %v793
    %v950 = vunpack.c.h.b16 %v793
    %v951 = vunpack.c.l.b16 %v794
    %v952 = vunpack.c.h.b16 %v794
    %v953 = vpack.c.b16 %v863, %v857
    %v954 = vpack.c.b16 %v864, %v858
    %v955 = vpack.c.b16 %v865, %v859
    %v956 = vpack.c.b16 %v866, %v860
    %v957 = vpack.c.b16 %v867, %v861
    %v958 = vpack.c.b16 %v868, %v862
    %v959 = vpack.c.b16 %v875, %v869
    %v960 = vpack.c.b16 %v876, %v870
    %v961 = vpack.c.b16 %v877, %v871
    %v962 = vpack.c.b16 %v878, %v872
    %v963 = vpack.c.b16 %v879, %v873
    %v964 = vpack.c.b16 %v880, %v874
    %v965 = vpack.c.b16 %v887, %v881
    %v966 = vpack.c.b16 %v888, %v882
    %v967 = vpack.c.b16 %v889, %v883
    %v968 = vpack.c.b16 %v890, %v884
    %v969 = vpack.c.b16 %v891, %v885
    %v970 = vpack.c.b16 %v892, %v886
    %v971 = vpack.c.b16 %v899, %v893
    %v972 = vpack.c.b16 %v900, %v894
    %v973 = vpack.c.b16 %v901, %v895
    %v974 = vpack.c.b16 %v902, %v896
    %v975 = vpack.c.b16 %v903, %v897
    %v976 = vpack.c.b16 %v904, %v898
    %v977 = vpack.c.b16 %v911, %v905
    %v978 = vpack.c.b16 %v912, %v906
    %v979 = vpack.c.b16 %v913, %v907
    %v980 = vpack.c.b16 %v914, %v908
    %v981 = vpack.c.b16 %v915, %v909
    %v982 = vpack.c.b16 %v916, %v910
    %v983 = vpack.c.b16 %v923, %v917
    %v984 = vpack.c.b16 %v924, %v918
    %v985 = vpack.c.b16 %v925, %v919
    %v986 = vpack.c.b16 %v926, %v920
    %v987 = vpack.c.b16 %v927, %v921
    %v988 = vpack.c.b16 %v928, %v922
    %v989 = vpack.c.b16 %v935, %v929
    %v990 = vpack.c.b16 %v936, %v930
    %v991 = vpack.c.b16 %v937, %v931
    %v992 = vpack.c.b16 %v938, %v932
    %v993 = vpack.c.b16 %v939, %v933
    %v994 = vpack.c.b16 %v940, %v934
    %v995 = vpack.c.b16 %v947, %v941
    %v996 = vpack.c.b16 %v948, %v942
    %v997 = vpack.c.b16 %v949, %v943
    %v998 = vpack.c.b16 %v950, %v944
    %v999 = vpack.c.b16 %v951, %v945
    %v1000 = vpack.c.b16 %v952, %v946
    %1049 = vmatpush.bf16.msra.mxu0 %v995
    %1050 = vmatpush.bf16.msra.mxu0 %v989
    %1051 = vmatpush.bf16.msra.mxu0 %v983
    %1052 = vmatpush.bf16.msra.mxu0 %v977
    %1053 = vmatpush.bf16.msra.mxu0 %v971
    %1054 = vmatpush.bf16.msra.mxu0 %v965
    %1055 = vmatpush.bf16.msra.mxu0 %v959
    %1056 = vmatpush.bf16.msra.mxu0 %v953
    %1057 = vmatmul.bf16.gmra.mxu0 %v745
    %v1058 = vpop.f32.mrf.mxu0
    %v1059 = vadd.f32 %v797, %v1058
    %v1060 = vpop.f32.mrf.mxu0
    %v1061 = vadd.f32 %v797, %v1060
    %1062 = vmatmul.bf16.gmra.mxu0 %v746
    %v1063 = vpop.f32.mrf.mxu0
    %v1064 = vadd.f32 %v797, %v1063
    %v1065 = vpop.f32.mrf.mxu0
    %v1066 = vadd.f32 %v797, %v1065
    %1067 = vdwg.mxu0
    %1068 = vmatpush.bf16.msra.mxu0 %v996
    %1069 = vmatpush.bf16.msra.mxu0 %v990
    %1070 = vmatpush.bf16.msra.mxu0 %v984
    %1071 = vmatpush.bf16.msra.mxu0 %v978
    %1072 = vmatpush.bf16.msra.mxu0 %v972
    %1073 = vmatpush.bf16.msra.mxu0 %v966
    %1074 = vmatpush.bf16.msra.mxu0 %v960
    %1075 = vmatpush.bf16.msra.mxu0 %v954
    %1076 = vmatmul.bf16.gmra.mxu0 %v745
    %v1077 = vpop.f32.mrf.mxu0
    %v1078 = vadd.f32 %v798, %v1077
    %v1079 = vpop.f32.mrf.mxu0
    %v1080 = vadd.f32 %v798, %v1079
    %1081 = vmatmul.bf16.gmra.mxu0 %v746
    %v1082 = vpop.f32.mrf.mxu0
    %v1083 = vadd.f32 %v798, %v1082
    %v1084 = vpop.f32.mrf.mxu0
    %v1085 = vadd.f32 %v798, %v1084
    %1086 = vdwg.mxu0
    %1087 = vmatpush.bf16.msra.mxu0 %v997
    %1088 = vmatpush.bf16.msra.mxu0 %v991
    %1089 = vmatpush.bf16.msra.mxu0 %v985
    %1090 = vmatpush.bf16.msra.mxu0 %v979
    %1091 = vmatpush.bf16.msra.mxu0 %v973
    %1092 = vmatpush.bf16.msra.mxu0 %v967
    %1093 = vmatpush.bf16.msra.mxu0 %v961
    %1094 = vmatpush.bf16.msra.mxu0 %v955
    %1095 = vmatmul.bf16.gmra.mxu0 %v745
    %v1096 = vpop.f32.mrf.mxu0
    %v1097 = vadd.f32 %v799, %v1096
    %v1098 = vpop.f32.mrf.mxu0
    %v1099 = vadd.f32 %v799, %v1098
    %1100 = vmatmul.bf16.gmra.mxu0 %v746
    %v1101 = vpop.f32.mrf.mxu0
    %v1102 = vadd.f32 %v799, %v1101
    %v1103 = vpop.f32.mrf.mxu0
    %v1104 = vadd.f32 %v799, %v1103
    %1105 = vdwg.mxu0
    %1106 = vmatpush.bf16.msra.mxu0 %v998
    %1107 = vmatpush.bf16.msra.mxu0 %v992
    %1108 = vmatpush.bf16.msra.mxu0 %v986
    %1109 = vmatpush.bf16.msra.mxu0 %v980
    %1110 = vmatpush.bf16.msra.mxu0 %v974
    %1111 = vmatpush.bf16.msra.mxu0 %v968
    %1112 = vmatpush.bf16.msra.mxu0 %v962
    %1113 = vmatpush.bf16.msra.mxu0 %v956
    %1114 = vmatmul.bf16.gmra.mxu0 %v745
    %v1115 = vpop.f32.mrf.mxu0
    %v1116 = vadd.f32 %v800, %v1115
    %v1117 = vpop.f32.mrf.mxu0
    %v1118 = vadd.f32 %v800, %v1117
    %1119 = vmatmul.bf16.gmra.mxu0 %v746
    %v1120 = vpop.f32.mrf.mxu0
    %v1121 = vadd.f32 %v800, %v1120
    %v1122 = vpop.f32.mrf.mxu0
    %v1123 = vadd.f32 %v800, %v1122
    %1124 = vdwg.mxu0
    %1125 = vmatpush.bf16.msra.mxu0 %v999
    %1126 = vmatpush.bf16.msra.mxu0 %v993
    %1127 = vmatpush.bf16.msra.mxu0 %v987
    %1128 = vmatpush.bf16.msra.mxu0 %v981
    %1129 = vmatpush.bf16.msra.mxu0 %v975
    %1130 = vmatpush.bf16.msra.mxu0 %v969
    %1131 = vmatpush.bf16.msra.mxu0 %v963
    %1132 = vmatpush.bf16.msra.mxu0 %v957
    %1133 = vmatmul.bf16.gmra.mxu0 %v745
    %v1134 = vpop.f32.mrf.mxu0
    %v1135 = vadd.f32 %v801, %v1134
    %v1136 = vpop.f32.mrf.mxu0
    %v1137 = vadd.f32 %v801, %v1136
    %1138 = vmatmul.bf16.gmra.mxu0 %v746
    %v1139 = vpop.f32.mrf.mxu0
    %v1140 = vadd.f32 %v801, %v1139
    %v1141 = vpop.f32.mrf.mxu0
    %v1142 = vadd.f32 %v801, %v1141
    %1143 = vdwg.mxu0
    %1144 = vmatpush.bf16.msra.mxu0 %v1000
    %1145 = vmatpush.bf16.msra.mxu0 %v994
    %1146 = vmatpush.bf16.msra.mxu0 %v988
    %1147 = vmatpush.bf16.msra.mxu0 %v982
    %1148 = vmatpush.bf16.msra.mxu0 %v976
    %1149 = vmatpush.bf16.msra.mxu0 %v970
    %1150 = vmatpush.bf16.msra.mxu0 %v964
    %1151 = vmatpush.bf16.msra.mxu0 %v958
    %1152 = vmatmul.bf16.gmra.mxu0 %v745
    %v1153 = vpop.f32.mrf.mxu0
    %v1154 = vadd.f32 %v802, %v1153
    %v1155 = vpop.f32.mrf.mxu0
    %v1156 = vadd.f32 %v802, %v1155
    %1157 = vmatmul.bf16.gmra.mxu0 %v746
    %v1158 = vpop.f32.mrf.mxu0
    %v1159 = vadd.f32 %v802, %v1158
    %v1160 = vpop.f32.mrf.mxu0
    %v1161 = vadd.f32 %v802, %v1160
    %1162 = vdwg.mxu0
    %v1163 = vxor.u32 %v1097, 2147483648
    %v1164 = vxor.u32 %v1116, 2147483648
    %v1165 = vxor.u32 %v1099, 2147483648
    %v1166 = vxor.u32 %v1118, 2147483648
    %v1167 = vxor.u32 %v1102, 2147483648
    %v1168 = vxor.u32 %v1121, 2147483648
    %v1169 = vxor.u32 %v1104, 2147483648
    %v1170 = vxor.u32 %v1123, 2147483648
    %v1171 = vmul.f32 %v1163, 1.442695
    %v1172 = vpow.pop %v1171
    %v1173 = vmul.f32 %v1164, 1.442695
    %v1174 = vpow.pop %v1173
    %v1175 = vmul.f32 %v1165, 1.442695
    %v1176 = vpow.pop %v1175
    %v1177 = vmul.f32 %v1166, 1.442695
    %v1178 = vpow.pop %v1177
    %v1179 = vmul.f32 %v1167, 1.442695
    %v1180 = vpow.pop %v1179
    %v1181 = vmul.f32 %v1168, 1.442695
    %v1182 = vpow.pop %v1181
    %v1183 = vmul.f32 %v1169, 1.442695
    %v1184 = vpow.pop %v1183
    %v1185 = vmul.f32 %v1170, 1.442695
    %v1186 = vpow.pop %v1185
    %v1187 = vadd.f32 %v1172, 1.0
    %v1188 = vadd.f32 %v1174, 1.0
    %v1189 = vadd.f32 %v1176, 1.0
    %v1190 = vadd.f32 %v1178, 1.0
    %v1191 = vadd.f32 %v1180, 1.0
    %v1192 = vadd.f32 %v1182, 1.0
    %v1193 = vadd.f32 %v1184, 1.0
    %v1194 = vadd.f32 %v1186, 1.0
    %v1195 = vrcp.pop %v1187
    %v1196 = vmul.f32 %v1187, %v1195
    %v1197 = vsub.f32 1.0, %v1196
    %v1198 = vmul.f32 %v1195, %v1197
    %v1199 = vadd.f32 %v1195, %v1198
    %vm1200 = vweird.f32 %v1187
    %vm1201 = vweird.f32 %v1195
    %vm1202 = vmor %vm1200, %vm1201
    %v1203 = vsel %vm1202, %v1195, %v1199
    %v1204 = vand.u32 2147483647, %v1187
    %vm1205 = vcmp.eq.f32.partialorder %v1204, 8.507059e+37
    %v1206 = vand.u32 %v1187, 2147483648
    %v1207 = vor.u32 1.1754944e-38, %v1206
    %v1208 = vsel %vm1205, %v1207, %v1203
    %v1209 = vmul.f32 1.0, %v1208
    %v1210 = vrcp.pop %v1188
    %v1211 = vmul.f32 %v1188, %v1210
    %v1212 = vsub.f32 1.0, %v1211
    %v1213 = vmul.f32 %v1210, %v1212
    %v1214 = vadd.f32 %v1210, %v1213
    %vm1215 = vweird.f32 %v1188
    %vm1216 = vweird.f32 %v1210
    %vm1217 = vmor %vm1215, %vm1216
    %v1218 = vsel %vm1217, %v1210, %v1214
    %v1219 = vand.u32 2147483647, %v1188
    %vm1220 = vcmp.eq.f32.partialorder %v1219, 8.507059e+37
    %v1221 = vand.u32 %v1188, 2147483648
    %v1222 = vor.u32 1.1754944e-38, %v1221
    %v1223 = vsel %vm1220, %v1222, %v1218
    %v1224 = vmul.f32 1.0, %v1223
    %v1225 = vrcp.pop %v1189
    %v1226 = vmul.f32 %v1189, %v1225
    %v1227 = vsub.f32 1.0, %v1226
    %v1228 = vmul.f32 %v1225, %v1227
    %v1229 = vadd.f32 %v1225, %v1228
    %vm1230 = vweird.f32 %v1189
    %vm1231 = vweird.f32 %v1225
    %vm1232 = vmor %vm1230, %vm1231
    %v1233 = vsel %vm1232, %v1225, %v1229
    %v1234 = vand.u32 2147483647, %v1189
    %vm1235 = vcmp.eq.f32.partialorder %v1234, 8.507059e+37
    %v1236 = vand.u32 %v1189, 2147483648
    %v1237 = vor.u32 1.1754944e-38, %v1236
    %v1238 = vsel %vm1235, %v1237, %v1233
    %v1239 = vmul.f32 1.0, %v1238
    %v1240 = vrcp.pop %v1190
    %v1241 = vmul.f32 %v1190, %v1240
    %v1242 = vsub.f32 1.0, %v1241
    %v1243 = vmul.f32 %v1240, %v1242
    %v1244 = vadd.f32 %v1240, %v1243
    %vm1245 = vweird.f32 %v1190
    %vm1246 = vweird.f32 %v1240
    %vm1247 = vmor %vm1245, %vm1246
    %v1248 = vsel %vm1247, %v1240, %v1244
    %v1249 = vand.u32 2147483647, %v1190
    %vm1250 = vcmp.eq.f32.partialorder %v1249, 8.507059e+37
    %v1251 = vand.u32 %v1190, 2147483648
    %v1252 = vor.u32 1.1754944e-38, %v1251
    %v1253 = vsel %vm1250, %v1252, %v1248
    %v1254 = vmul.f32 1.0, %v1253
    %v1255 = vrcp.pop %v1191
    %v1256 = vmul.f32 %v1191, %v1255
    %v1257 = vsub.f32 1.0, %v1256
    %v1258 = vmul.f32 %v1255, %v1257
    %v1259 = vadd.f32 %v1255, %v1258
    %vm1260 = vweird.f32 %v1191
    %vm1261 = vweird.f32 %v1255
    %vm1262 = vmor %vm1260, %vm1261
    %v1263 = vsel %vm1262, %v1255, %v1259
    %v1264 = vand.u32 2147483647, %v1191
    %vm1265 = vcmp.eq.f32.partialorder %v1264, 8.507059e+37
    %v1266 = vand.u32 %v1191, 2147483648
    %v1267 = vor.u32 1.1754944e-38, %v1266
    %v1268 = vsel %vm1265, %v1267, %v1263
    %v1269 = vmul.f32 1.0, %v1268
    %v1270 = vrcp.pop %v1192
    %v1271 = vmul.f32 %v1192, %v1270
    %v1272 = vsub.f32 1.0, %v1271
    %v1273 = vmul.f32 %v1270, %v1272
    %v1274 = vadd.f32 %v1270, %v1273
    %vm1275 = vweird.f32 %v1192
    %vm1276 = vweird.f32 %v1270
    %vm1277 = vmor %vm1275, %vm1276
    %v1278 = vsel %vm1277, %v1270, %v1274
    %v1279 = vand.u32 2147483647, %v1192
    %vm1280 = vcmp.eq.f32.partialorder %v1279, 8.507059e+37
    %v1281 = vand.u32 %v1192, 2147483648
    %v1282 = vor.u32 1.1754944e-38, %v1281
    %v1283 = vsel %vm1280, %v1282, %v1278
    %v1284 = vmul.f32 1.0, %v1283
    %v1285 = vrcp.pop %v1193
    %v1286 = vmul.f32 %v1193, %v1285
    %v1287 = vsub.f32 1.0, %v1286
    %v1288 = vmul.f32 %v1285, %v1287
    %v1289 = vadd.f32 %v1285, %v1288
    %vm1290 = vweird.f32 %v1193
    %vm1291 = vweird.f32 %v1285
    %vm1292 = vmor %vm1290, %vm1291
    %v1293 = vsel %vm1292, %v1285, %v1289
    %v1294 = vand.u32 2147483647, %v1193
    %vm1295 = vcmp.eq.f32.partialorder %v1294, 8.507059e+37
    %v1296 = vand.u32 %v1193, 2147483648
    %v1297 = vor.u32 1.1754944e-38, %v1296
    %v1298 = vsel %vm1295, %v1297, %v1293
    %v1299 = vmul.f32 1.0, %v1298
    %v1300 = vrcp.pop %v1194
    %v1301 = vmul.f32 %v1194, %v1300
    %v1302 = vsub.f32 1.0, %v1301
    %v1303 = vmul.f32 %v1300, %v1302
    %v1304 = vadd.f32 %v1300, %v1303
    %vm1305 = vweird.f32 %v1194
    %vm1306 = vweird.f32 %v1300
    %vm1307 = vmor %vm1305, %vm1306
    %v1308 = vsel %vm1307, %v1300, %v1304
    %v1309 = vand.u32 2147483647, %v1194
    %vm1310 = vcmp.eq.f32.partialorder %v1309, 8.507059e+37
    %v1311 = vand.u32 %v1194, 2147483648
    %v1312 = vor.u32 1.1754944e-38, %v1311
    %v1313 = vsel %vm1310, %v1312, %v1308
    %v1314 = vmul.f32 1.0, %v1313
    %v1315 = vadd.f32 %v1059, %v1209
    %v1316 = vadd.f32 %v1078, %v1224
    %v1317 = vadd.f32 %v1061, %v1239
    %v1318 = vadd.f32 %v1080, %v1254
    %v1319 = vadd.f32 %v1064, %v1269
    %v1320 = vadd.f32 %v1083, %v1284
    %v1321 = vadd.f32 %v1066, %v1299
    %v1322 = vadd.f32 %v1085, %v1314
    %v1323 = vadd.f32 %v1315, %v1135
    %v1324 = vadd.f32 %v1316, %v1154
    %v1325 = vadd.f32 %v1317, %v1137
    %v1326 = vadd.f32 %v1318, %v1156
    %v1327 = vadd.f32 %v1319, %v1140
    %v1328 = vadd.f32 %v1320, %v1159
    %v1329 = vadd.f32 %v1321, %v1142
    %v1330 = vadd.f32 %v1322, %v1161
    %v1331 = vmax.f32 %v1323, 0.0
    %v1332 = vmax.f32 %v1324, 0.0
    %v1333 = vmax.f32 %v1325, 0.0
    %v1334 = vmax.f32 %v1326, 0.0
    %v1335 = vmax.f32 %v1327, 0.0
    %v1336 = vmax.f32 %v1328, 0.0
    %v1337 = vmax.f32 %v1329, 0.0
    %v1338 = vmax.f32 %v1330, 0.0
    %v1339 = vadd.f32 %v500, %v1331
    %v1340 = vadd.f32 %v501, %v1332
    %v1341 = vadd.f32 %v502, %v1333
    %v1342 = vadd.f32 %v503, %v1334
    %v1343 = vadd.f32 %v504, %v1335
    %v1344 = vadd.f32 %v505, %v1336
    %v1345 = vadd.f32 %v506, %v1337
    %v1346 = vadd.f32 %v507, %v1338
    %v1347 = vadd.f32 %v1339, %v1341
    %v1348 = vadd.f32 %v1347, %v1343
    %v1349 = vadd.f32 %v1348, %v1345
    %v1350 = vrot.slane %v1349, 4
    %v1351 = vadd.f32 %v1349, %v1350
    %v1352 = vrot.slane %v1351, 2
    %v1353 = vadd.f32 %v1351, %v1352
    %v1354 = vrot.slane %v1353, 1
    %v1355 = vadd.f32 %v1353, %v1354
    %v1356 = vadd.f32 %v1340, %v1342
    %v1357 = vadd.f32 %v1356, %v1344
    %v1358 = vadd.f32 %v1357, %v1346
    %v1359 = vrot.slane %v1358, 4
    %v1360 = vadd.f32 %v1358, %v1359
    %v1361 = vrot.slane %v1360, 2
    %v1362 = vadd.f32 %v1360, %v1361
    %v1363 = vrot.slane %v1362, 1
    %v1364 = vadd.f32 %v1362, %v1363
    %v1365 = vpack.c.bf16 %v1355, %v1355
    %v1366 = vpack.c.bf16 %v1364, %v1364
    %v1367 = vld [vmem:[#allocation6] sm:$0xff]
    %v1368 = vld [vmem:[#allocation6 + $0x8] sm:$0xff]
    %v1369 = vld [vmem:[#allocation6 + $0x10] sm:$0xff]
    %v1370 = vld [vmem:[#allocation6 + $0x18] sm:$0xff]
    %v1371 = vld [vmem:[#allocation6 + $0x20] sm:$0xff]
    %v1372 = vld [vmem:[#allocation6 + $0x28] sm:$0xff]
    %v1373 = vld [vmem:[#allocation6 + $0x30] sm:$0xff]
    %v1374 = vld [vmem:[#allocation6 + $0x38] sm:$0xff]
    %v1375 = vld [vmem:[#allocation6 + $0x40] sm:$0xff]
    %v1376 = vld [vmem:[#allocation6 + $0x48] sm:$0xff]
    %v1377 = vld [vmem:[#allocation6 + $0x50] sm:$0xff]
    %v1378 = vld [vmem:[#allocation6 + $0x58] sm:$0xff]
    %v1379 = vld [vmem:[#allocation6 + $0x60] sm:$0xff]
    %v1380 = vld [vmem:[#allocation6 + $0x68] sm:$0xff]
    %v1381 = vld [vmem:[#allocation6 + $0x70] sm:$0xff]
    %v1382 = vld [vmem:[#allocation6 + $0x78] sm:$0xff]
    %v1383 = vld [vmem:[#allocation6 + $0x80] sm:$0xff]
    %v1384 = vld [vmem:[#allocation6 + $0x88] sm:$0xff]
    %v1385 = vld [vmem:[#allocation6 + $0x90] sm:$0xff]
    %v1386 = vld [vmem:[#allocation6 + $0x98] sm:$0xff]
    %v1387 = vld [vmem:[#allocation6 + $0xa0] sm:$0xff]
    %v1388 = vld [vmem:[#allocation6 + $0xa8] sm:$0xff]
    %v1389 = vld [vmem:[#allocation6 + $0xb0] sm:$0xff]
    %v1390 = vld [vmem:[#allocation6 + $0xb8] sm:$0xff]
    %v1391 = vld [vmem:[#allocation6 + $0xc0] sm:$0xff]
    %v1392 = vld [vmem:[#allocation6 + $0xc8] sm:$0xff]
    %v1393 = vld [vmem:[#allocation6 + $0xd0] sm:$0xff]
    %v1394 = vld [vmem:[#allocation6 + $0xd8] sm:$0xff]
    %v1395 = vld [vmem:[#allocation6 + $0xe0] sm:$0xff]
    %v1396 = vld [vmem:[#allocation6 + $0xe8] sm:$0xff]
    %v1397 = vld [vmem:[#allocation6 + $0xf0] sm:$0xff]
    %v1398 = vld [vmem:[#allocation6 + $0xf8] sm:$0xff]
    %v1431 = vunpack.c.l.b16 %v1367
    %v1432 = vunpack.c.h.b16 %v1367
    %v1433 = vunpack.c.l.b16 %v1368
    %v1434 = vunpack.c.h.b16 %v1368
    %v1435 = vunpack.c.l.b16 %v1369
    %v1436 = vunpack.c.h.b16 %v1369
    %v1437 = vunpack.c.l.b16 %v1370
    %v1438 = vunpack.c.h.b16 %v1370
    %v1439 = vunpack.c.l.b16 %v1371
    %v1440 = vunpack.c.h.b16 %v1371
    %v1441 = vunpack.c.l.b16 %v1372
    %v1442 = vunpack.c.h.b16 %v1372
    %v1443 = vunpack.c.l.b16 %v1373
    %v1444 = vunpack.c.h.b16 %v1373
    %v1445 = vunpack.c.l.b16 %v1374
    %v1446 = vunpack.c.h.b16 %v1374
    %v1447 = vunpack.c.l.b16 %v1375
    %v1448 = vunpack.c.h.b16 %v1375
    %v1449 = vunpack.c.l.b16 %v1376
    %v1450 = vunpack.c.h.b16 %v1376
    %v1451 = vunpack.c.l.b16 %v1377
    %v1452 = vunpack.c.h.b16 %v1377
    %v1453 = vunpack.c.l.b16 %v1378
    %v1454 = vunpack.c.h.b16 %v1378
    %v1455 = vunpack.c.l.b16 %v1379
    %v1456 = vunpack.c.h.b16 %v1379
    %v1457 = vunpack.c.l.b16 %v1380
    %v1458 = vunpack.c.h.b16 %v1380
    %v1459 = vunpack.c.l.b16 %v1381
    %v1460 = vunpack.c.h.b16 %v1381
    %v1461 = vunpack.c.l.b16 %v1382
    %v1462 = vunpack.c.h.b16 %v1382
    %v1463 = vunpack.c.l.b16 %v1383
    %v1464 = vunpack.c.h.b16 %v1383
    %v1465 = vunpack.c.l.b16 %v1384
    %v1466 = vunpack.c.h.b16 %v1384
    %v1467 = vunpack.c.l.b16 %v1385
    %v1468 = vunpack.c.h.b16 %v1385
    %v1469 = vunpack.c.l.b16 %v1386
    %v1470 = vunpack.c.h.b16 %v1386
    %v1471 = vunpack.c.l.b16 %v1387
    %v1472 = vunpack.c.h.b16 %v1387
    %v1473 = vunpack.c.l.b16 %v1388
    %v1474 = vunpack.c.h.b16 %v1388
    %v1475 = vunpack.c.l.b16 %v1389
    %v1476 = vunpack.c.h.b16 %v1389
    %v1477 = vunpack.c.l.b16 %v1390
    %v1478 = vunpack.c.h.b16 %v1390
    %v1479 = vunpack.c.l.b16 %v1391
    %v1480 = vunpack.c.h.b16 %v1391
    %v1481 = vunpack.c.l.b16 %v1392
    %v1482 = vunpack.c.h.b16 %v1392
    %v1483 = vunpack.c.l.b16 %v1393
    %v1484 = vunpack.c.h.b16 %v1393
    %v1485 = vunpack.c.l.b16 %v1394
    %v1486 = vunpack.c.h.b16 %v1394
    %v1487 = vunpack.c.l.b16 %v1395
    %v1488 = vunpack.c.h.b16 %v1395
    %v1489 = vunpack.c.l.b16 %v1396
    %v1490 = vunpack.c.h.b16 %v1396
    %v1491 = vunpack.c.l.b16 %v1397
    %v1492 = vunpack.c.h.b16 %v1397
    %v1493 = vunpack.c.l.b16 %v1398
    %v1494 = vunpack.c.h.b16 %v1398
    %v1495 = vpack.c.b16 %v1433, %v1431
    %v1496 = vpack.c.b16 %v1434, %v1432
    %v1497 = vpack.c.b16 %v1437, %v1435
    %v1498 = vpack.c.b16 %v1438, %v1436
    %v1499 = vpack.c.b16 %v1441, %v1439
    %v1500 = vpack.c.b16 %v1442, %v1440
    %v1501 = vpack.c.b16 %v1445, %v1443
    %v1502 = vpack.c.b16 %v1446, %v1444
    %v1503 = vpack.c.b16 %v1449, %v1447
    %v1504 = vpack.c.b16 %v1450, %v1448
    %v1505 = vpack.c.b16 %v1453, %v1451
    %v1506 = vpack.c.b16 %v1454, %v1452
    %v1507 = vpack.c.b16 %v1457, %v1455
    %v1508 = vpack.c.b16 %v1458, %v1456
    %v1509 = vpack.c.b16 %v1461, %v1459
    %v1510 = vpack.c.b16 %v1462, %v1460
    %v1511 = vpack.c.b16 %v1465, %v1463
    %v1512 = vpack.c.b16 %v1466, %v1464
    %v1513 = vpack.c.b16 %v1469, %v1467
    %v1514 = vpack.c.b16 %v1470, %v1468
    %v1515 = vpack.c.b16 %v1473, %v1471
    %v1516 = vpack.c.b16 %v1474, %v1472
    %v1517 = vpack.c.b16 %v1477, %v1475
    %v1518 = vpack.c.b16 %v1478, %v1476
    %v1519 = vpack.c.b16 %v1481, %v1479
    %v1520 = vpack.c.b16 %v1482, %v1480
    %v1521 = vpack.c.b16 %v1485, %v1483
    %v1522 = vpack.c.b16 %v1486, %v1484
    %v1523 = vpack.c.b16 %v1489, %v1487
    %v1524 = vpack.c.b16 %v1490, %v1488
    %v1525 = vpack.c.b16 %v1493, %v1491
    %v1526 = vpack.c.b16 %v1494, %v1492
    %1559 = vmatpush.bf16.msra.mxu0 %v1509
    %1560 = vmatpush.bf16.msra.mxu0 %v1507
    %1561 = vmatpush.bf16.msra.mxu0 %v1505
    %1562 = vmatpush.bf16.msra.mxu0 %v1503
    %1563 = vmatpush.bf16.msra.mxu0 %v1501
    %1564 = vmatpush.bf16.msra.mxu0 %v1499
    %1565 = vmatpush.bf16.msra.mxu0 %v1497
    %1566 = vmatpush.bf16.msra.mxu0 %v1495
    %1567 = vmatmul.bf16.gmra.mxu0 %v1365
    %v1568 = vpop.f32.mrf.mxu0
    %v1569 = vadd.f32 0.0, %v1568
    %v1570 = vpop.f32.mrf.mxu0
    %1571 = vdwg.mxu0
    %1572 = vmatpush.bf16.msra.mxu0 %v1525
    %1573 = vmatpush.bf16.msra.mxu0 %v1523
    %1574 = vmatpush.bf16.msra.mxu0 %v1521
    %1575 = vmatpush.bf16.msra.mxu0 %v1519
    %1576 = vmatpush.bf16.msra.mxu0 %v1517
    %1577 = vmatpush.bf16.msra.mxu0 %v1515
    %1578 = vmatpush.bf16.msra.mxu0 %v1513
    %1579 = vmatpush.bf16.msra.mxu0 %v1511
    %1580 = vmatmul.bf16.gmra.mxu0 %v1366
    %v1581 = vpop.f32.mrf.mxu0
    %v1582 = vadd.f32 %v1569, %v1581
    %v1583 = vpop.f32.mrf.mxu0
    %1584 = vdwg.mxu0
    %1585 = vmatpush.bf16.msra.mxu0 %v1510
    %1586 = vmatpush.bf16.msra.mxu0 %v1508
    %1587 = vmatpush.bf16.msra.mxu0 %v1506
    %1588 = vmatpush.bf16.msra.mxu0 %v1504
    %1589 = vmatpush.bf16.msra.mxu0 %v1502
    %1590 = vmatpush.bf16.msra.mxu0 %v1500
    %1591 = vmatpush.bf16.msra.mxu0 %v1498
    %1592 = vmatpush.bf16.msra.mxu0 %v1496
    %1593 = vmatmul.bf16.gmra.mxu0 %v1365
    %v1594 = vpop.f32.mrf.mxu0
    %v1595 = vadd.f32 0.0, %v1594
    %v1596 = vpop.f32.mrf.mxu0
    %1597 = vdwg.mxu0
    %1598 = vmatpush.bf16.msra.mxu0 %v1526
    %1599 = vmatpush.bf16.msra.mxu0 %v1524
    %1600 = vmatpush.bf16.msra.mxu0 %v1522
    %1601 = vmatpush.bf16.msra.mxu0 %v1520
    %1602 = vmatpush.bf16.msra.mxu0 %v1518
    %1603 = vmatpush.bf16.msra.mxu0 %v1516
    %1604 = vmatpush.bf16.msra.mxu0 %v1514
    %1605 = vmatpush.bf16.msra.mxu0 %v1512
    %1606 = vmatmul.bf16.gmra.mxu0 %v1366
    %v1607 = vpop.f32.mrf.mxu0
    %v1608 = vadd.f32 %v1595, %v1607
    %v1609 = vpop.f32.mrf.mxu0
    %1610 = vdwg.mxu0
    %v1611 = vmax.f32 %v1582, 0.0
    %v1612 = vmax.f32 %v1608, 0.0
    %v1613 = vxor.u32 %v1611, 2147483648
    %v1614 = vxor.u32 %v1612, 2147483648
    %v1615 = vmul.f32 %v1613, 1.442695
    %v1616 = vpow.pop %v1615
    %v1617 = vmul.f32 %v1614, 1.442695
    %v1618 = vpow.pop %v1617
    %v1619 = vadd.f32 %v1616, 1.0
    %v1620 = vadd.f32 %v1618, 1.0
    %v1621 = vrcp.pop %v1619
    %v1622 = vmul.f32 %v1619, %v1621
    %v1623 = vsub.f32 1.0, %v1622
    %v1624 = vmul.f32 %v1621, %v1623
    %v1625 = vadd.f32 %v1621, %v1624
    %vm1626 = vweird.f32 %v1619
    %vm1627 = vweird.f32 %v1621
    %vm1628 = vmor %vm1626, %vm1627
    %v1629 = vsel %vm1628, %v1621, %v1625
    %v1630 = vand.u32 2147483647, %v1619
    %vm1631 = vcmp.eq.f32.partialorder %v1630, 8.507059e+37
    %v1632 = vand.u32 %v1619, 2147483648
    %v1633 = vor.u32 1.1754944e-38, %v1632
    %v1634 = vsel %vm1631, %v1633, %v1629
    %v1635 = vmul.f32 1.0, %v1634
    %v1636 = vrcp.pop %v1620
    %v1637 = vmul.f32 %v1620, %v1636
    %v1638 = vsub.f32 1.0, %v1637
    %v1639 = vmul.f32 %v1636, %v1638
    %v1640 = vadd.f32 %v1636, %v1639
    %vm1641 = vweird.f32 %v1620
    %vm1642 = vweird.f32 %v1636
    %vm1643 = vmor %vm1641, %vm1642
    %v1644 = vsel %vm1643, %v1636, %v1640
    %v1645 = vand.u32 2147483647, %v1620
    %vm1646 = vcmp.eq.f32.partialorder %v1645, 8.507059e+37
    %v1647 = vand.u32 %v1620, 2147483648
    %v1648 = vor.u32 1.1754944e-38, %v1647
    %v1649 = vsel %vm1646, %v1648, %v1644
    %v1650 = vmul.f32 1.0, %v1649
    %v1651 = vperm.slane %v1635, 0
    %v1652 = vperm.slane %v1650, 0
    %v1653 = vmul.f32 %v500, %v1651
    %v1654 = vmul.f32 %v501, %v1652
    %v1655 = vmul.f32 %v502, %v1651
    %v1656 = vmul.f32 %v503, %v1652
    %v1657 = vmul.f32 %v504, %v1651
    %v1658 = vmul.f32 %v505, %v1652
    %v1659 = vmul.f32 %v506, %v1651
    %v1660 = vmul.f32 %v507, %v1652
    %v1661 = vadd.f32 %v1653, %v1331
    %v1662 = vadd.f32 %v1654, %v1332
    %v1663 = vadd.f32 %v1655, %v1333
    %v1664 = vadd.f32 %v1656, %v1334
    %v1665 = vadd.f32 %v1657, %v1335
    %v1666 = vadd.f32 %v1658, %v1336
    %v1667 = vadd.f32 %v1659, %v1337
    %v1668 = vadd.f32 %v1660, %v1338
    %v1669 = vadd.f32 %v1661, %v1662
    %1670 = vadd.xlane.f32.xlu0 %v1669
    %v1671 = vpop.xlane.xlu0 %1670
    %v1672 = vadd.f32 %v1663, %v1664
    %1673 = vadd.xlane.f32.xlu0 %v1672
    %v1674 = vpop.xlane.xlu0 %1673
    %v1675 = vadd.f32 %v1665, %v1666
    %1676 = vadd.xlane.f32.xlu0 %v1675
    %v1677 = vpop.xlane.xlu0 %1676
    %v1678 = vadd.f32 %v1667, %v1668
    %1679 = vadd.xlane.f32.xlu0 %v1678
    %v1680 = vpop.xlane.xlu0 %1679
    %v1681 = vmul.f32 %v1661, %v1661
    %v1682 = vmul.f32 %v1662, %v1662
    %v1683 = vmul.f32 %v1663, %v1663
    %v1684 = vmul.f32 %v1664, %v1664
    %v1685 = vmul.f32 %v1665, %v1665
    %v1686 = vmul.f32 %v1666, %v1666
    %v1687 = vmul.f32 %v1667, %v1667
    %v1688 = vmul.f32 %v1668, %v1668
    %v1689 = vadd.f32 %v1681, %v1682
    %1690 = vadd.xlane.f32.xlu0 %v1689
    %v1691 = vpop.xlane.xlu0 %1690
    %v1692 = vadd.f32 %v1683, %v1684
    %1693 = vadd.xlane.f32.xlu0 %v1692
    %v1694 = vpop.xlane.xlu0 %1693
    %v1695 = vadd.f32 %v1685, %v1686
    %1696 = vadd.xlane.f32.xlu0 %v1695
    %v1697 = vpop.xlane.xlu0 %1696
    %v1698 = vadd.f32 %v1687, %v1688
    %1699 = vadd.xlane.f32.xlu0 %v1698
    %v1700 = vpop.xlane.xlu0 %1699
    %v1701 = vadd.f32 %v1671, %v1677
    %v1702 = vadd.f32 %v1674, %v1680
    %v1703 = vadd.f32 %v1691, %v1697
    %v1704 = vadd.f32 %v1694, %v1700
    %v1705 = vmul.f32 %v1701, 0.0026041667
    %v1706 = vmul.f32 %v1702, 0.0026041667
    %v1707 = vmul.f32 %v1703, 0.0026041667
    %v1708 = vmul.f32 %v1704, 0.0026041667
    %v1709 = vmul.f32 %v1705, %v1705
    %v1710 = vmul.f32 %v1706, %v1706
    %v1711 = vsub.f32 %v1707, %v1709
    %v1712 = vsub.f32 %v1708, %v1710
    %v1713 = vadd.f32 %v1711, 1e-05
    %v1714 = vadd.f32 %v1712, 1e-05
    %v1715 = vrsqrt.pop %v1713
    %v1716 = vmul.f32 %v1715, %v1713
    %v1717 = vmul.f32 %v1716, %v1715
    %v1718 = vmul.f32 0.5, %v1717
    %v1719 = vsub.f32 1.5, %v1718
    %v1720 = vmul.f32 %v1715, %v1719
    %vm1721 = vweird.f32 %v1713
    %vm1722 = vweird.f32 %v1715
    %vm1723 = vmor %vm1721, %vm1722
    %v1724 = vsel %vm1723, %v1715, %v1720
    %v1725 = vrsqrt.pop %v1714
    %v1726 = vmul.f32 %v1725, %v1714
    %v1727 = vmul.f32 %v1726, %v1725
    %v1728 = vmul.f32 0.5, %v1727
    %v1729 = vsub.f32 1.5, %v1728
    %v1730 = vmul.f32 %v1725, %v1729
    %vm1731 = vweird.f32 %v1714
    %vm1732 = vweird.f32 %v1725
    %vm1733 = vmor %vm1731, %vm1732
    %v1734 = vsel %vm1733, %v1725, %v1730
    %v1735 = vld [vmem:[%s8] sm:$0xff]
    %v1736 = vld [vmem:[%s8 + $0x8] sm:$0xff]
    %v1737 = vmul.f32 %v1724, %v1735
    %v1738 = vmul.f32 %v1734, %v1736
    %v1739 = vld [vmem:[%s9] sm:$0xff]
    %v1740 = vld [vmem:[%s9 + $0x8] sm:$0xff]
    %v1741 = vmul.f32 %v1705, %v1737
    %v1742 = vmul.f32 %v1706, %v1738
    %v1743 = vsub.f32 %v1739, %v1741
    %v1744 = vsub.f32 %v1740, %v1742
    %1746 = vset.pattern.permute.xlu0 0
    %1747 = vperm.xlu0 %1746, %v1737
    %v1748 = vpop.permute.xlu0 %1747
    %1751 = vset.pattern.permute.xlu0 0
    %1752 = vperm.xlu0 %1751, %v1738
    %v1753 = vpop.permute.xlu0 %1752
    %v1755 = vmul.f32 %v1661, %v1748
    %v1756 = vmul.f32 %v1662, %v1748
    %v1757 = vmul.f32 %v1663, %v1753
    %v1758 = vmul.f32 %v1664, %v1753
    %v1759 = vmul.f32 %v1665, %v1748
    %v1760 = vmul.f32 %v1666, %v1748
    %v1761 = vmul.f32 %v1667, %v1753
    %v1762 = vmul.f32 %v1668, %v1753
    %1764 = vset.pattern.permute.xlu0 0
    %1765 = vperm.xlu0 %1764, %v1743
    %v1766 = vpop.permute.xlu0 %1765
    %1769 = vset.pattern.permute.xlu0 0
    %1770 = vperm.xlu0 %1769, %v1744
    %v1771 = vpop.permute.xlu0 %1770
    %v1773 = vadd.f32 %v1755, %v1766
    %v1774 = vadd.f32 %v1756, %v1766
    %v1775 = vadd.f32 %v1757, %v1771
    %v1776 = vadd.f32 %v1758, %v1771
    %v1777 = vadd.f32 %v1759, %v1766
    %v1778 = vadd.f32 %v1760, %v1766
    %v1779 = vadd.f32 %v1761, %v1771
    %v1780 = vadd.f32 %v1762, %v1771
    %1781 = vst [vmem:[%s10] sm:$0xff] %v1773
    %vm1782 = vcmask 523264
    %1783 = vst.msk [vmem:[%s10 + $0x8] sm:$0xff] %vm1782, %v1774
    %1784 = vst [vmem:[%s10 + $0x10] sm:$0xff] %v1775
    %1785 = vst.msk [vmem:[%s10 + $0x18] sm:$0xff] %vm1782, %v1776
    %1786 = vst [vmem:[%s10 + $0x20] sm:$0xff] %v1777
    %1787 = vst.msk [vmem:[%s10 + $0x28] sm:$0xff] %vm1782, %v1778
    %1788 = vst [vmem:[%s10 + $0x30] sm:$0xff] %v1779
    %1789 = vst.msk [vmem:[%s10 + $0x38] sm:$0xff] %vm1782, %v1780
    // Predicated region
    $region54: #{forward.1} parent=1 // pred_check
      _
    $region55: #{forward.1} parent=1 // pred_check_branch
      %1791 = sbr.rel (0) target = $region57
    $region56: #{forward.1} parent=1 // pred_region
      _
    $region57: #{forward.1} parent=1 // pred_fallthru
      _
    // Predicated region
    $region58: #{forward.1} parent=1 // pred_check
      _
    $region59: #{forward.1} parent=1 // pred_check_branch
      %1793 = sbr.rel (0) target = $region61
    $region60: #{forward.1} parent=1 // pred_region
      _
    $region61: #{forward.1} parent=1 // pred_fallthru
      _
    %1794 = vsyncpa [#allocation3], 1
    %1795 = vsyncpa [#allocation5], 1

</llo_original>
